<compile_context>
chip_gen: v6e
topology: v6e:2x2x1
jax: 0.10.0
libtpu: 0.0.40
codegen_flags: <defaults>
</compile_context>

<pallas_src>
import math
import functools

import jax
import jax.numpy as jnp
from jax import lax
from jax.experimental import pallas as pl
from jax.experimental.pallas import tpu as pltpu


# ----------------------------------------------------------------------------- helpers
def _layer_norm(h, gamma, beta, eps=1e-5):
    mean = jnp.mean(h, axis=-1, keepdims=True)
    var = jnp.mean((h - mean) ** 2, axis=-1, keepdims=True)
    return (h - mean) * lax.rsqrt(var + eps) * gamma + beta


def _gelu_exact(x):
    # PyTorch nn.GELU() default is the exact erf formulation.
    return 0.5 * x * (1.0 + lax.erf(x * 0.7071067811865476))


def _pick_seqs_per_block(batch, seq_len, target_rows=256):
    """Largest divisor of `batch` whose row count (BB*S) stays ~<= target_rows,
    respecting the (8, 128) sublane tiling constraint when the block does not
    cover the full flattened array."""
    best = 1
    for cand in range(1, batch + 1):
        if batch % cand == 0 and cand * seq_len <= max(target_rows, seq_len):
            best = cand
    # If not taking whole array along rows, the (second-to-last) block dim must
    # be a multiple of 8.  Fall back to the full batch (grid of 1) otherwise.
    if best != batch and (best * seq_len) % 8 != 0:
        best = batch
    return best


def _vmem_limit_bytes():
    try:
        cap = int(pltpu.get_tpu_info().vmem_capacity_bytes)
        if cap >= (32 << 20):
            return (cap * 3) // 4
    except Exception:
        return None
    return None


# ----------------------------------------------------------------------------- kernel
def encoder_kernel(
    x_ref,
    wq_ref, bq_ref, wk_ref, bk_ref, wv_ref, bv_ref, wo_ref, bo_ref,
    g1_ref, be1_ref,
    w1_ref, b1_ref, w2_ref, b2_ref,
    g2_ref, be2_ref,
    o_ref,
    *, num_heads: int, seqs_per_block: int, seq_len: int,
):
    f32 = jnp.float32
    bf16 = jnp.bfloat16

    x = x_ref[...]                              # (BB*S, D) float32
    rows, D = x.shape
    S = seq_len
    BB = seqs_per_block
    H = num_heads
    d_k = D // H
    scale = f32(1.0 / math.sqrt(d_k))

    # --- Q/K/V projections over all BB*S rows at once (bf16 MXU, f32 accum) ----
    xb = x.astype(bf16)
    q = jnp.dot(xb, wq_ref[...], preferred_element_type=f32) + bq_ref[...]
    k = jnp.dot(xb, wk_ref[...], preferred_element_type=f32) + bk_ref[...]
    v = jnp.dot(xb, wv_ref[...], preferred_element_type=f32) + bv_ref[...]

    q3 = q.astype(bf16).reshape(BB, S, D)
    k3 = k.astype(bf16).reshape(BB, S, D)
    v3 = v.astype(bf16).reshape(BB, S, D)

    # --- scaled dot product attention (static loop over heads; batched einsums) -
    heads = []
    for h in range(H):                          # static loop over heads
        cs = slice(h * d_k, (h + 1) * d_k)
        q_h = q3[:, :, cs]                      # (BB, S, d_k) bf16
        k_h = k3[:, :, cs]
        v_h = v3[:, :, cs]
        # contract last dims directly -- no materialized transpose of k.
        s = jnp.einsum('bqd,bkd->bqk', q_h, k_h,
                       preferred_element_type=f32) * scale              # (BB, S, S)
        s = s - jnp.max(s, axis=-1, keepdims=True)
        p = jnp.exp(s)
        denom = jnp.sum(p, axis=-1, keepdims=True)
        p = p * pl.reciprocal(denom, approx=True)                        # EUP slot
        heads.append(jnp.einsum('bqk,bkd->bqd', p.astype(bf16), v_h,
                                preferred_element_type=f32))             # (BB, S, d_k)
    ctx = jnp.concatenate(heads, axis=-1).reshape(rows, D)                # (BB*S, D)

    attn = jnp.dot(ctx.astype(bf16), wo_ref[...], preferred_element_type=f32) + bo_ref[...]

    # --- residual + LayerNorm 1 (f32) -------------------------------------------
    ff_in = _layer_norm(x + attn, g1_ref[...], be1_ref[...])

    # --- feed forward: Linear -> GELU -> Linear (bf16 MXU, f32 elementwise) ------
    hidden = jnp.dot(ff_in.astype(bf16), w1_ref[...], preferred_element_type=f32) + b1_ref[...]
    hidden = _gelu_exact(hidden)
    ff_out = jnp.dot(hidden.astype(bf16), w2_ref[...], preferred_element_type=f32) + b2_ref[...]

    # --- residual + LayerNorm 2 ---------------------------------------------------
    o_ref[...] = _layer_norm(ff_in + ff_out, g2_ref[...], be2_ref[...]).astype(o_ref.dtype)


# ----------------------------------------------------------------------------- wrapper
def encoder_forward(x, params, num_heads):
    B, S, D = x.shape
    d_ff = params["w1"].shape[1]

    BB = _pick_seqs_per_block(B, S)             # sequences per grid step
    rows = BB * S
    grid = (B // BB,)

    x2d = x.reshape(B * S, D).astype(jnp.float32)

    to_bf16 = lambda a: a.astype(jnp.bfloat16)
    to_f32 = lambda a: a.astype(jnp.float32)

    row_spec = pl.BlockSpec((rows, D), lambda i: (i, 0))

    def full(shape):
        return pl.BlockSpec(shape, lambda i, _s=shape: tuple(0 for _ in _s))

    in_specs = [
        row_spec,                                           # x   (flattened rows)
        full((D, D)), full((1, D)),                         # Wq, bq
        full((D, D)), full((1, D)),                         # Wk, bk
        full((D, D)), full((1, D)),                         # Wv, bv
        full((D, D)), full((1, D)),                         # Wo, bo
        full((1, D)), full((1, D)),                         # norm1 gamma/beta
        full((D, d_ff)), full((1, d_ff)),                   # W1, b1
        full((d_ff, D)), full((1, D)),                      # W2, b2
        full((1, D)), full((1, D)),                         # norm2 gamma/beta
    ]

    kernel = functools.partial(
        encoder_kernel, num_heads=num_heads, seqs_per_block=BB, seq_len=S)

    # Advisory cost estimate for XLA's scheduler around the custom call.
    flops = int(2 * B * S * D * (4 * D + 2 * d_ff) + 4 * B * S * S * D)
    transcendentals = int(B * S * (num_heads * S + d_ff))
    bytes_accessed = int(
        2 * B * S * D * 4                       # x in + out (f32)
        + (4 * D * D + 2 * D * d_ff) * 2        # weights (bf16)
        + (8 * D + d_ff) * 4                    # biases + LN params (f32)
    )

    cp_kwargs = dict(dimension_semantics=("parallel",))
    vl = _vmem_limit_bytes()
    if vl is not None:
        cp_kwargs["vmem_limit_bytes"] = vl

    out2d = pl.pallas_call(
        kernel,
        out_shape=jax.ShapeDtypeStruct((B * S, D), jnp.float32),
        grid=grid,
        in_specs=in_specs,
        out_specs=row_spec,
        compiler_params=pltpu.CompilerParams(**cp_kwargs),
        cost_estimate=pl.CostEstimate(
            flops=flops, transcendentals=transcendentals, bytes_accessed=bytes_accessed),
    )(
        x2d,
        to_bf16(params["wq"]), to_f32(params["bq"]),
        to_bf16(params["wk"]), to_f32(params["bk"]),
        to_bf16(params["wv"]), to_f32(params["bv"]),
        to_bf16(params["wo"]), to_f32(params["bo"]),
        to_f32(params["g1"]), to_f32(params["be1"]),
        to_bf16(params["w1"]), to_f32(params["b1"]),
        to_bf16(params["w2"]), to_f32(params["b2"]),
        to_f32(params["g2"]), to_f32(params["be2"]),
    )
    return out2d.reshape(B, S, D)


# ----------------------------------------------------------------------------- reference
def encoder_reference(x, p, num_heads):
    """Pure-JAX (f32) reference mirroring the PyTorch forward (dropout = identity)."""
    B, S, D = x.shape
    d_k = D // num_heads

    def lin(a, w, b):
        return a @ w + b[0]

    q = lin(x, p["wq"], p["bq"]).reshape(B, S, num_heads, d_k).transpose(0, 2, 1, 3)
    k = lin(x, p["wk"], p["bk"]).reshape(B, S, num_heads, d_k).transpose(0, 2, 1, 3)
    v = lin(x, p["wv"], p["bv"]).reshape(B, S, num_heads, d_k).transpose(0, 2, 1, 3)
    att = jax.nn.softmax(jnp.einsum("bhqd,bhkd->bhqk", q, k) / math.sqrt(d_k), axis=-1)
    ctx = jnp.einsum("bhqk,bhkd->bhqd", att, v).transpose(0, 2, 1, 3).reshape(B, S, D)
    attn_out = lin(ctx, p["wo"], p["bo"])

    def ln(h, g, b):
        m = jnp.mean(h, axis=-1, keepdims=True)
        var = jnp.mean((h - m) ** 2, axis=-1, keepdims=True)
        return (h - m) / jnp.sqrt(var + 1e-5) * g[0] + b[0]

    ff_in = ln(x + attn_out, p["g1"], p["be1"])
    hidden = jax.nn.gelu(lin(ff_in, p["w1"], p["b1"]), approximate=False)
    ff_out = lin(hidden, p["w2"], p["b2"])
    return ln(ff_in + ff_out, p["g2"], p["be2"])


def init_params(key, d_model, d_ff):
    keys = jax.random.split(key, 12)

    def linear(kw, kb, fan_in, fan_out):
        bound = 1.0 / math.sqrt(fan_in)
        # stored as [in, out] (already transposed relative to torch's [out, in])
        w = jax.random.uniform(kw, (fan_in, fan_out), jnp.float32, -bound, bound)
        b = jax.random.uniform(kb, (1, fan_out), jnp.float32, -bound, bound)
        return w, b

    wq, bq = linear(keys[0], keys[1], d_model, d_model)
    wk, bk = linear(keys[2], keys[3], d_model, d_model)
    wv, bv = linear(keys[4], keys[5], d_model, d_model)
    wo, bo = linear(keys[6], keys[7], d_model, d_model)
    w1, b1 = linear(keys[8], keys[9], d_model, d_ff)
    w2, b2 = linear(keys[10], keys[11], d_ff, d_model)

    ones = jnp.ones((1, d_model), jnp.float32)
    zeros = jnp.zeros((1, d_model), jnp.float32)
    return dict(
        wq=wq, bq=bq, wk=wk, bk=bk, wv=wv, bv=bv, wo=wo, bo=bo,
        w1=w1, b1=b1, w2=w2, b2=b2,
        g1=ones, be1=zeros, g2=ones, be2=zeros,
    )


if __name__ == "__main__":
    B, S, D, H = 2, 8, 32, 4          # batch, seq, d_model, num_heads
    D_FF = 4 * D

    key = jax.random.PRNGKey(0)
    kx, kp = jax.random.split(key)
    x = jax.random.normal(kx, (B, S, D), jnp.float32)
    params = init_params(kp, D, D_FF)

    out = encoder_forward(x, params, H)
    out = jax.block_until_ready(out)

    ref = encoder_reference(x, params, H)
    assert out.shape == (B, S, D)
    # bf16 MXU inputs (f32 accumulation) -> relaxed tolerance vs the f32 reference.
    assert jnp.allclose(out, ref, atol=5e-2, rtol=5e-2), "mismatch vs JAX reference"

    print("KERNEL_OK")
</pallas_src>

<mosaic_0001>
module attributes {stable_mosaic.version = 11 : i64} {
  func.func @encoder_kernel(%arg0: i32, %arg1: memref<16x32xf32, #tpu.memory_space<vmem>>, %arg2: memref<32x32xbf16, #tpu.memory_space<vmem>>, %arg3: memref<1x32xf32, #tpu.memory_space<vmem>>, %arg4: memref<32x32xbf16, #tpu.memory_space<vmem>>, %arg5: memref<1x32xf32, #tpu.memory_space<vmem>>, %arg6: memref<32x32xbf16, #tpu.memory_space<vmem>>, %arg7: memref<1x32xf32, #tpu.memory_space<vmem>>, %arg8: memref<32x32xbf16, #tpu.memory_space<vmem>>, %arg9: memref<1x32xf32, #tpu.memory_space<vmem>>, %arg10: memref<1x32xf32, #tpu.memory_space<vmem>>, %arg11: memref<1x32xf32, #tpu.memory_space<vmem>>, %arg12: memref<32x128xbf16, #tpu.memory_space<vmem>>, %arg13: memref<1x128xf32, #tpu.memory_space<vmem>>, %arg14: memref<128x32xbf16, #tpu.memory_space<vmem>>, %arg15: memref<1x32xf32, #tpu.memory_space<vmem>>, %arg16: memref<1x32xf32, #tpu.memory_space<vmem>>, %arg17: memref<1x32xf32, #tpu.memory_space<vmem>>, %arg18: memref<16x32xf32, #tpu.memory_space<vmem>>) attributes {dimension_semantics = [#tpu.dimension_semantics<parallel>], iteration_bounds = array<i64: 1>, scalar_prefetch = 0 : i64, scratch_operands = 0 : i64, tpu.core_type = #tpu.core_type<tc>, window_params = [{transform_indices = @transform_0, window_bounds = array<i64: 16, 32>}, {pipeline_mode = #tpu.pipeline_mode<synchronous>, transform_indices = @transform_1, window_bounds = array<i64: 32, 32>}, {pipeline_mode = #tpu.pipeline_mode<synchronous>, transform_indices = @transform_2, window_bounds = array<i64: 1, 32>}, {pipeline_mode = #tpu.pipeline_mode<synchronous>, transform_indices = @transform_3, window_bounds = array<i64: 32, 32>}, {pipeline_mode = #tpu.pipeline_mode<synchronous>, transform_indices = @transform_4, window_bounds = array<i64: 1, 32>}, {pipeline_mode = #tpu.pipeline_mode<synchronous>, transform_indices = @transform_5, window_bounds = array<i64: 32, 32>}, {pipeline_mode = #tpu.pipeline_mode<synchronous>, transform_indices = @transform_6, window_bounds = array<i64: 1, 32>}, {pipeline_mode = #tpu.pipeline_mode<synchronous>, transform_indices = @transform_7, window_bounds = array<i64: 32, 32>}, {pipeline_mode = #tpu.pipeline_mode<synchronous>, transform_indices = @transform_8, window_bounds = array<i64: 1, 32>}, {pipeline_mode = #tpu.pipeline_mode<synchronous>, transform_indices = @transform_9, window_bounds = array<i64: 1, 32>}, {pipeline_mode = #tpu.pipeline_mode<synchronous>, transform_indices = @transform_10, window_bounds = array<i64: 1, 32>}, {pipeline_mode = #tpu.pipeline_mode<synchronous>, transform_indices = @transform_11, window_bounds = array<i64: 32, 128>}, {pipeline_mode = #tpu.pipeline_mode<synchronous>, transform_indices = @transform_12, window_bounds = array<i64: 1, 128>}, {pipeline_mode = #tpu.pipeline_mode<synchronous>, transform_indices = @transform_13, window_bounds = array<i64: 128, 32>}, {pipeline_mode = #tpu.pipeline_mode<synchronous>, transform_indices = @transform_14, window_bounds = array<i64: 1, 32>}, {pipeline_mode = #tpu.pipeline_mode<synchronous>, transform_indices = @transform_15, window_bounds = array<i64: 1, 32>}, {pipeline_mode = #tpu.pipeline_mode<synchronous>, transform_indices = @transform_16, window_bounds = array<i64: 1, 32>}, {transform_indices = @transform_17, window_bounds = array<i64: 16, 32>}]} {
    %c0 = arith.constant 0 : index
    %c0_0 = arith.constant 0 : index
    %0 = vector.load %arg1[%c0, %c0_0] : memref<16x32xf32, #tpu.memory_space<vmem>>, vector<16x32xf32>
    %1 = arith.truncf %0 : vector<16x32xf32> to vector<16x32xbf16>
    %c0_1 = arith.constant 0 : index
    %c0_2 = arith.constant 0 : index
    %2 = vector.load %arg2[%c0_1, %c0_2] : memref<32x32xbf16, #tpu.memory_space<vmem>>, vector<32x32xbf16>
    %cst = arith.constant dense<0.000000e+00> : vector<16x32xf32>
    %3 = tpu.matmul %1, %2, %cst {dimension_numbers = #tpu.dot_dimension_numbers<[1], [0], [0], [1], [0, 0, 1, 1], [], []>} : vector<16x32xbf16>, vector<32x32xbf16>, vector<16x32xf32> -> vector<16x32xf32>
    %c0_3 = arith.constant 0 : index
    %c0_4 = arith.constant 0 : index
    %4 = vector.load %arg3[%c0_3, %c0_4] : memref<1x32xf32, #tpu.memory_space<vmem>>, vector<1x32xf32>
    %5 = vector.broadcast %4 : vector<1x32xf32> to vector<16x32xf32>
    %6 = arith.addf %3, %5 : vector<16x32xf32>
    %c0_5 = arith.constant 0 : index
    %c0_6 = arith.constant 0 : index
    %7 = vector.load %arg4[%c0_5, %c0_6] : memref<32x32xbf16, #tpu.memory_space<vmem>>, vector<32x32xbf16>
    %cst_7 = arith.constant dense<0.000000e+00> : vector<16x32xf32>
    %8 = tpu.matmul %1, %7, %cst_7 {dimension_numbers = #tpu.dot_dimension_numbers<[1], [0], [0], [1], [0, 0, 1, 1], [], []>} : vector<16x32xbf16>, vector<32x32xbf16>, vector<16x32xf32> -> vector<16x32xf32>
    %c0_8 = arith.constant 0 : index
    %c0_9 = arith.constant 0 : index
    %9 = vector.load %arg5[%c0_8, %c0_9] : memref<1x32xf32, #tpu.memory_space<vmem>>, vector<1x32xf32>
    %10 = vector.broadcast %9 : vector<1x32xf32> to vector<16x32xf32>
    %11 = arith.addf %8, %10 : vector<16x32xf32>
    %c0_10 = arith.constant 0 : index
    %c0_11 = arith.constant 0 : index
    %12 = vector.load %arg6[%c0_10, %c0_11] : memref<32x32xbf16, #tpu.memory_space<vmem>>, vector<32x32xbf16>
    %cst_12 = arith.constant dense<0.000000e+00> : vector<16x32xf32>
    %13 = tpu.matmul %1, %12, %cst_12 {dimension_numbers = #tpu.dot_dimension_numbers<[1], [0], [0], [1], [0, 0, 1, 1], [], []>} : vector<16x32xbf16>, vector<32x32xbf16>, vector<16x32xf32> -> vector<16x32xf32>
    %c0_13 = arith.constant 0 : index
    %c0_14 = arith.constant 0 : index
    %14 = vector.load %arg7[%c0_13, %c0_14] : memref<1x32xf32, #tpu.memory_space<vmem>>, vector<1x32xf32>
    %15 = vector.broadcast %14 : vector<1x32xf32> to vector<16x32xf32>
    %16 = arith.addf %13, %15 : vector<16x32xf32>
    %17 = arith.truncf %6 : vector<16x32xf32> to vector<16x32xbf16>
    %18 = vector.shape_cast %17 : vector<16x32xbf16> to vector<2x8x32xbf16>
    %19 = arith.truncf %11 : vector<16x32xf32> to vector<16x32xbf16>
    %20 = vector.shape_cast %19 : vector<16x32xbf16> to vector<2x8x32xbf16>
    %21 = arith.truncf %16 : vector<16x32xf32> to vector<16x32xbf16>
    %22 = vector.shape_cast %21 : vector<16x32xbf16> to vector<2x8x32xbf16>
    %23 = vector.extract_strided_slice %18 {offsets = [0, 0, 0], sizes = [2, 8, 8], strides = [1, 1, 1]} : vector<2x8x32xbf16> to vector<2x8x8xbf16>
    %24 = vector.extract_strided_slice %20 {offsets = [0, 0, 0], sizes = [2, 8, 8], strides = [1, 1, 1]} : vector<2x8x32xbf16> to vector<2x8x8xbf16>
    %25 = vector.extract_strided_slice %22 {offsets = [0, 0, 0], sizes = [2, 8, 8], strides = [1, 1, 1]} : vector<2x8x32xbf16> to vector<2x8x8xbf16>
    "tpu.trace_start"() <{level = 10 : i32, message = "bqd,bkd->bqk"}> : () -> ()
    %cst_15 = arith.constant dense<0.000000e+00> : vector<2x8x8xf32>
    %26 = tpu.matmul %23, %24, %cst_15 {dimension_numbers = #tpu.dot_dimension_numbers<[2], [2], [1], [1], [0, 0, 0, 1, 1, 1], [0], [0]>} : vector<2x8x8xbf16>, vector<2x8x8xbf16>, vector<2x8x8xf32> -> vector<2x8x8xf32>
    "tpu.trace_stop"() : () -> ()
    %cst_16 = arith.constant 0.353553385 : f32
    %27 = vector.broadcast %cst_16 : f32 to vector<2x8x8xf32>
    %28 = arith.mulf %26, %27 : vector<2x8x8xf32>
    %cst_17 = arith.constant dense<0xFF800000> : vector<2x8xf32>
    %29 = vector.multi_reduction <maximumf>, %28, %cst_17 [2] : vector<2x8x8xf32> to vector<2x8xf32>
    %30 = vector.shape_cast %29 : vector<2x8xf32> to vector<2x8x1xf32>
    %31 = vector.broadcast %30 : vector<2x8x1xf32> to vector<2x8x8xf32>
    %32 = arith.subf %28, %31 : vector<2x8x8xf32>
    %33 = math.exp %32 : vector<2x8x8xf32>
    %cst_18 = arith.constant dense<0.000000e+00> : vector<2x8xf32>
    %34 = vector.multi_reduction <add>, %33, %cst_18 [2] : vector<2x8x8xf32> to vector<2x8xf32>
    %35 = vector.shape_cast %34 : vector<2x8xf32> to vector<2x8x1xf32>
    %36 = tpu.reciprocal %35 {approx = true} : vector<2x8x1xf32> -> vector<2x8x1xf32>
    %37 = vector.broadcast %36 : vector<2x8x1xf32> to vector<2x8x8xf32>
    %38 = arith.mulf %33, %37 : vector<2x8x8xf32>
    %39 = arith.truncf %38 : vector<2x8x8xf32> to vector<2x8x8xbf16>
    "tpu.trace_start"() <{level = 10 : i32, message = "bqk,bkd->bqd"}> : () -> ()
    %cst_19 = arith.constant dense<0.000000e+00> : vector<2x8x8xf32>
    %40 = tpu.matmul %39, %25, %cst_19 {dimension_numbers = #tpu.dot_dimension_numbers<[2], [1], [1], [2], [0, 0, 0, 1, 1, 2], [0], [0]>} : vector<2x8x8xbf16>, vector<2x8x8xbf16>, vector<2x8x8xf32> -> vector<2x8x8xf32>
    "tpu.trace_stop"() : () -> ()
    %41 = vector.extract_strided_slice %18 {offsets = [0, 0, 8], sizes = [2, 8, 8], strides = [1, 1, 1]} : vector<2x8x32xbf16> to vector<2x8x8xbf16>
    %42 = vector.extract_strided_slice %20 {offsets = [0, 0, 8], sizes = [2, 8, 8], strides = [1, 1, 1]} : vector<2x8x32xbf16> to vector<2x8x8xbf16>
    %43 = vector.extract_strided_slice %22 {offsets = [0, 0, 8], sizes = [2, 8, 8], strides = [1, 1, 1]} : vector<2x8x32xbf16> to vector<2x8x8xbf16>
    "tpu.trace_start"() <{level = 10 : i32, message = "bqd,bkd->bqk"}> : () -> ()
    %cst_20 = arith.constant dense<0.000000e+00> : vector<2x8x8xf32>
    %44 = tpu.matmul %41, %42, %cst_20 {dimension_numbers = #tpu.dot_dimension_numbers<[2], [2], [1], [1], [0, 0, 0, 1, 1, 1], [0], [0]>} : vector<2x8x8xbf16>, vector<2x8x8xbf16>, vector<2x8x8xf32> -> vector<2x8x8xf32>
    "tpu.trace_stop"() : () -> ()
    %cst_21 = arith.constant 0.353553385 : f32
    %45 = vector.broadcast %cst_21 : f32 to vector<2x8x8xf32>
    %46 = arith.mulf %44, %45 : vector<2x8x8xf32>
    %cst_22 = arith.constant dense<0xFF800000> : vector<2x8xf32>
    %47 = vector.multi_reduction <maximumf>, %46, %cst_22 [2] : vector<2x8x8xf32> to vector<2x8xf32>
    %48 = vector.shape_cast %47 : vector<2x8xf32> to vector<2x8x1xf32>
    %49 = vector.broadcast %48 : vector<2x8x1xf32> to vector<2x8x8xf32>
    %50 = arith.subf %46, %49 : vector<2x8x8xf32>
    %51 = math.exp %50 : vector<2x8x8xf32>
    %cst_23 = arith.constant dense<0.000000e+00> : vector<2x8xf32>
    %52 = vector.multi_reduction <add>, %51, %cst_23 [2] : vector<2x8x8xf32> to vector<2x8xf32>
    %53 = vector.shape_cast %52 : vector<2x8xf32> to vector<2x8x1xf32>
    %54 = tpu.reciprocal %53 {approx = true} : vector<2x8x1xf32> -> vector<2x8x1xf32>
    %55 = vector.broadcast %54 : vector<2x8x1xf32> to vector<2x8x8xf32>
    %56 = arith.mulf %51, %55 : vector<2x8x8xf32>
    %57 = arith.truncf %56 : vector<2x8x8xf32> to vector<2x8x8xbf16>
    "tpu.trace_start"() <{level = 10 : i32, message = "bqk,bkd->bqd"}> : () -> ()
    %cst_24 = arith.constant dense<0.000000e+00> : vector<2x8x8xf32>
    %58 = tpu.matmul %57, %43, %cst_24 {dimension_numbers = #tpu.dot_dimension_numbers<[2], [1], [1], [2], [0, 0, 0, 1, 1, 2], [0], [0]>} : vector<2x8x8xbf16>, vector<2x8x8xbf16>, vector<2x8x8xf32> -> vector<2x8x8xf32>
    "tpu.trace_stop"() : () -> ()
    %59 = vector.extract_strided_slice %18 {offsets = [0, 0, 16], sizes = [2, 8, 8], strides = [1, 1, 1]} : vector<2x8x32xbf16> to vector<2x8x8xbf16>
    %60 = vector.extract_strided_slice %20 {offsets = [0, 0, 16], sizes = [2, 8, 8], strides = [1, 1, 1]} : vector<2x8x32xbf16> to vector<2x8x8xbf16>
    %61 = vector.extract_strided_slice %22 {offsets = [0, 0, 16], sizes = [2, 8, 8], strides = [1, 1, 1]} : vector<2x8x32xbf16> to vector<2x8x8xbf16>
    "tpu.trace_start"() <{level = 10 : i32, message = "bqd,bkd->bqk"}> : () -> ()
    %cst_25 = arith.constant dense<0.000000e+00> : vector<2x8x8xf32>
    %62 = tpu.matmul %59, %60, %cst_25 {dimension_numbers = #tpu.dot_dimension_numbers<[2], [2], [1], [1], [0, 0, 0, 1, 1, 1], [0], [0]>} : vector<2x8x8xbf16>, vector<2x8x8xbf16>, vector<2x8x8xf32> -> vector<2x8x8xf32>
    "tpu.trace_stop"() : () -> ()
    %cst_26 = arith.constant 0.353553385 : f32
    %63 = vector.broadcast %cst_26 : f32 to vector<2x8x8xf32>
    %64 = arith.mulf %62, %63 : vector<2x8x8xf32>
    %cst_27 = arith.constant dense<0xFF800000> : vector<2x8xf32>
    %65 = vector.multi_reduction <maximumf>, %64, %cst_27 [2] : vector<2x8x8xf32> to vector<2x8xf32>
    %66 = vector.shape_cast %65 : vector<2x8xf32> to vector<2x8x1xf32>
    %67 = vector.broadcast %66 : vector<2x8x1xf32> to vector<2x8x8xf32>
    %68 = arith.subf %64, %67 : vector<2x8x8xf32>
    %69 = math.exp %68 : vector<2x8x8xf32>
    %cst_28 = arith.constant dense<0.000000e+00> : vector<2x8xf32>
    %70 = vector.multi_reduction <add>, %69, %cst_28 [2] : vector<2x8x8xf32> to vector<2x8xf32>
    %71 = vector.shape_cast %70 : vector<2x8xf32> to vector<2x8x1xf32>
    %72 = tpu.reciprocal %71 {approx = true} : vector<2x8x1xf32> -> vector<2x8x1xf32>
    %73 = vector.broadcast %72 : vector<2x8x1xf32> to vector<2x8x8xf32>
    %74 = arith.mulf %69, %73 : vector<2x8x8xf32>
    %75 = arith.truncf %74 : vector<2x8x8xf32> to vector<2x8x8xbf16>
    "tpu.trace_start"() <{level = 10 : i32, message = "bqk,bkd->bqd"}> : () -> ()
    %cst_29 = arith.constant dense<0.000000e+00> : vector<2x8x8xf32>
    %76 = tpu.matmul %75, %61, %cst_29 {dimension_numbers = #tpu.dot_dimension_numbers<[2], [1], [1], [2], [0, 0, 0, 1, 1, 2], [0], [0]>} : vector<2x8x8xbf16>, vector<2x8x8xbf16>, vector<2x8x8xf32> -> vector<2x8x8xf32>
    "tpu.trace_stop"() : () -> ()
    %77 = vector.extract_strided_slice %18 {offsets = [0, 0, 24], sizes = [2, 8, 8], strides = [1, 1, 1]} : vector<2x8x32xbf16> to vector<2x8x8xbf16>
    %78 = vector.extract_strided_slice %20 {offsets = [0, 0, 24], sizes = [2, 8, 8], strides = [1, 1, 1]} : vector<2x8x32xbf16> to vector<2x8x8xbf16>
    %79 = vector.extract_strided_slice %22 {offsets = [0, 0, 24], sizes = [2, 8, 8], strides = [1, 1, 1]} : vector<2x8x32xbf16> to vector<2x8x8xbf16>
    "tpu.trace_start"() <{level = 10 : i32, message = "bqd,bkd->bqk"}> : () -> ()
    %cst_30 = arith.constant dense<0.000000e+00> : vector<2x8x8xf32>
    %80 = tpu.matmul %77, %78, %cst_30 {dimension_numbers = #tpu.dot_dimension_numbers<[2], [2], [1], [1], [0, 0, 0, 1, 1, 1], [0], [0]>} : vector<2x8x8xbf16>, vector<2x8x8xbf16>, vector<2x8x8xf32> -> vector<2x8x8xf32>
    "tpu.trace_stop"() : () -> ()
    %cst_31 = arith.constant 0.353553385 : f32
    %81 = vector.broadcast %cst_31 : f32 to vector<2x8x8xf32>
    %82 = arith.mulf %80, %81 : vector<2x8x8xf32>
    %cst_32 = arith.constant dense<0xFF800000> : vector<2x8xf32>
    %83 = vector.multi_reduction <maximumf>, %82, %cst_32 [2] : vector<2x8x8xf32> to vector<2x8xf32>
    %84 = vector.shape_cast %83 : vector<2x8xf32> to vector<2x8x1xf32>
    %85 = vector.broadcast %84 : vector<2x8x1xf32> to vector<2x8x8xf32>
    %86 = arith.subf %82, %85 : vector<2x8x8xf32>
    %87 = math.exp %86 : vector<2x8x8xf32>
    %cst_33 = arith.constant dense<0.000000e+00> : vector<2x8xf32>
    %88 = vector.multi_reduction <add>, %87, %cst_33 [2] : vector<2x8x8xf32> to vector<2x8xf32>
    %89 = vector.shape_cast %88 : vector<2x8xf32> to vector<2x8x1xf32>
    %90 = tpu.reciprocal %89 {approx = true} : vector<2x8x1xf32> -> vector<2x8x1xf32>
    %91 = vector.broadcast %90 : vector<2x8x1xf32> to vector<2x8x8xf32>
    %92 = arith.mulf %87, %91 : vector<2x8x8xf32>
    %93 = arith.truncf %92 : vector<2x8x8xf32> to vector<2x8x8xbf16>
    "tpu.trace_start"() <{level = 10 : i32, message = "bqk,bkd->bqd"}> : () -> ()
    %cst_34 = arith.constant dense<0.000000e+00> : vector<2x8x8xf32>
    %94 = tpu.matmul %93, %79, %cst_34 {dimension_numbers = #tpu.dot_dimension_numbers<[2], [1], [1], [2], [0, 0, 0, 1, 1, 2], [0], [0]>} : vector<2x8x8xbf16>, vector<2x8x8xbf16>, vector<2x8x8xf32> -> vector<2x8x8xf32>
    "tpu.trace_stop"() : () -> ()
    %95 = tpu.concatenate %40, %58, %76, %94 in 2 : vector<2x8x8xf32>, vector<2x8x8xf32>, vector<2x8x8xf32>, vector<2x8x8xf32> -> vector<2x8x32xf32>
    %96 = vector.shape_cast %95 : vector<2x8x32xf32> to vector<16x32xf32>
    %97 = arith.truncf %96 : vector<16x32xf32> to vector<16x32xbf16>
    %c0_35 = arith.constant 0 : index
    %c0_36 = arith.constant 0 : index
    %98 = vector.load %arg8[%c0_35, %c0_36] : memref<32x32xbf16, #tpu.memory_space<vmem>>, vector<32x32xbf16>
    %cst_37 = arith.constant dense<0.000000e+00> : vector<16x32xf32>
    %99 = tpu.matmul %97, %98, %cst_37 {dimension_numbers = #tpu.dot_dimension_numbers<[1], [0], [0], [1], [0, 0, 1, 1], [], []>} : vector<16x32xbf16>, vector<32x32xbf16>, vector<16x32xf32> -> vector<16x32xf32>
    %c0_38 = arith.constant 0 : index
    %c0_39 = arith.constant 0 : index
    %100 = vector.load %arg9[%c0_38, %c0_39] : memref<1x32xf32, #tpu.memory_space<vmem>>, vector<1x32xf32>
    %101 = vector.broadcast %100 : vector<1x32xf32> to vector<16x32xf32>
    %102 = arith.addf %99, %101 : vector<16x32xf32>
    %103 = arith.addf %0, %102 : vector<16x32xf32>
    %c0_40 = arith.constant 0 : index
    %c0_41 = arith.constant 0 : index
    %104 = vector.load %arg10[%c0_40, %c0_41] : memref<1x32xf32, #tpu.memory_space<vmem>>, vector<1x32xf32>
    %c0_42 = arith.constant 0 : index
    %c0_43 = arith.constant 0 : index
    %105 = vector.load %arg11[%c0_42, %c0_43] : memref<1x32xf32, #tpu.memory_space<vmem>>, vector<1x32xf32>
    %cst_44 = arith.constant dense<0.000000e+00> : vector<16xf32>
    %106 = vector.multi_reduction <add>, %103, %cst_44 [1] : vector<16x32xf32> to vector<16xf32>
    %107 = vector.shape_cast %106 : vector<16xf32> to vector<16x1xf32>
    %cst_45 = arith.constant 3.200000e+01 : f32
    %108 = vector.broadcast %cst_45 : f32 to vector<16x1xf32>
    %109 = arith.divf %107, %108 : vector<16x1xf32>
    %110 = vector.broadcast %109 : vector<16x1xf32> to vector<16x32xf32>
    %111 = arith.subf %103, %110 : vector<16x32xf32>
    %112 = arith.mulf %111, %111 : vector<16x32xf32>
    %cst_46 = arith.constant dense<0.000000e+00> : vector<16xf32>
    %113 = vector.multi_reduction <add>, %112, %cst_46 [1] : vector<16x32xf32> to vector<16xf32>
    %114 = vector.shape_cast %113 : vector<16xf32> to vector<16x1xf32>
    %cst_47 = arith.constant 3.200000e+01 : f32
    %115 = vector.broadcast %cst_47 : f32 to vector<16x1xf32>
    %116 = arith.divf %114, %115 : vector<16x1xf32>
    %117 = vector.broadcast %109 : vector<16x1xf32> to vector<16x32xf32>
    %118 = arith.subf %103, %117 : vector<16x32xf32>
    %cst_48 = arith.constant 9.99999974E-6 : f32
    %119 = vector.broadcast %cst_48 : f32 to vector<16x1xf32>
    %120 = arith.addf %116, %119 : vector<16x1xf32>
    %121 = math.rsqrt %120 : vector<16x1xf32>
    %122 = vector.broadcast %121 : vector<16x1xf32> to vector<16x32xf32>
    %123 = arith.mulf %118, %122 : vector<16x32xf32>
    %124 = vector.broadcast %104 : vector<1x32xf32> to vector<16x32xf32>
    %125 = arith.mulf %123, %124 : vector<16x32xf32>
    %126 = vector.broadcast %105 : vector<1x32xf32> to vector<16x32xf32>
    %127 = arith.addf %125, %126 : vector<16x32xf32>
    %128 = arith.truncf %127 : vector<16x32xf32> to vector<16x32xbf16>
    %c0_49 = arith.constant 0 : index
    %c0_50 = arith.constant 0 : index
    %129 = vector.load %arg12[%c0_49, %c0_50] : memref<32x128xbf16, #tpu.memory_space<vmem>>, vector<32x128xbf16>
    %cst_51 = arith.constant dense<0.000000e+00> : vector<16x128xf32>
    %130 = tpu.matmul %128, %129, %cst_51 {dimension_numbers = #tpu.dot_dimension_numbers<[1], [0], [0], [1], [0, 0, 1, 1], [], []>} : vector<16x32xbf16>, vector<32x128xbf16>, vector<16x128xf32> -> vector<16x128xf32>
    %c0_52 = arith.constant 0 : index
    %c0_53 = arith.constant 0 : index
    %131 = vector.load %arg13[%c0_52, %c0_53] : memref<1x128xf32, #tpu.memory_space<vmem>>, vector<1x128xf32>
    %132 = vector.broadcast %131 : vector<1x128xf32> to vector<16x128xf32>
    %133 = arith.addf %130, %132 : vector<16x128xf32>
    %cst_54 = arith.constant 5.000000e-01 : f32
    %134 = vector.broadcast %cst_54 : f32 to vector<16x128xf32>
    %135 = arith.mulf %134, %133 : vector<16x128xf32>
    %cst_55 = arith.constant 0.707106769 : f32
    %136 = vector.broadcast %cst_55 : f32 to vector<16x128xf32>
    %137 = arith.mulf %133, %136 : vector<16x128xf32>
    %138 = math.erf %137 : vector<16x128xf32>
    %cst_56 = arith.constant 1.000000e+00 : f32
    %139 = vector.broadcast %cst_56 : f32 to vector<16x128xf32>
    %140 = arith.addf %139, %138 : vector<16x128xf32>
    %141 = arith.mulf %135, %140 : vector<16x128xf32>
    %142 = arith.truncf %141 : vector<16x128xf32> to vector<16x128xbf16>
    %c0_57 = arith.constant 0 : index
    %c0_58 = arith.constant 0 : index
    %143 = vector.load %arg14[%c0_57, %c0_58] : memref<128x32xbf16, #tpu.memory_space<vmem>>, vector<128x32xbf16>
    %cst_59 = arith.constant dense<0.000000e+00> : vector<16x32xf32>
    %144 = tpu.matmul %142, %143, %cst_59 {dimension_numbers = #tpu.dot_dimension_numbers<[1], [0], [0], [1], [0, 0, 1, 1], [], []>} : vector<16x128xbf16>, vector<128x32xbf16>, vector<16x32xf32> -> vector<16x32xf32>
    %c0_60 = arith.constant 0 : index
    %c0_61 = arith.constant 0 : index
    %145 = vector.load %arg15[%c0_60, %c0_61] : memref<1x32xf32, #tpu.memory_space<vmem>>, vector<1x32xf32>
    %146 = vector.broadcast %145 : vector<1x32xf32> to vector<16x32xf32>
    %147 = arith.addf %144, %146 : vector<16x32xf32>
    %148 = arith.addf %127, %147 : vector<16x32xf32>
    %c0_62 = arith.constant 0 : index
    %c0_63 = arith.constant 0 : index
    %149 = vector.load %arg16[%c0_62, %c0_63] : memref<1x32xf32, #tpu.memory_space<vmem>>, vector<1x32xf32>
    %c0_64 = arith.constant 0 : index
    %c0_65 = arith.constant 0 : index
    %150 = vector.load %arg17[%c0_64, %c0_65] : memref<1x32xf32, #tpu.memory_space<vmem>>, vector<1x32xf32>
    %cst_66 = arith.constant dense<0.000000e+00> : vector<16xf32>
    %151 = vector.multi_reduction <add>, %148, %cst_66 [1] : vector<16x32xf32> to vector<16xf32>
    %152 = vector.shape_cast %151 : vector<16xf32> to vector<16x1xf32>
    %cst_67 = arith.constant 3.200000e+01 : f32
    %153 = vector.broadcast %cst_67 : f32 to vector<16x1xf32>
    %154 = arith.divf %152, %153 : vector<16x1xf32>
    %155 = vector.broadcast %154 : vector<16x1xf32> to vector<16x32xf32>
    %156 = arith.subf %148, %155 : vector<16x32xf32>
    %157 = arith.mulf %156, %156 : vector<16x32xf32>
    %cst_68 = arith.constant dense<0.000000e+00> : vector<16xf32>
    %158 = vector.multi_reduction <add>, %157, %cst_68 [1] : vector<16x32xf32> to vector<16xf32>
    %159 = vector.shape_cast %158 : vector<16xf32> to vector<16x1xf32>
    %cst_69 = arith.constant 3.200000e+01 : f32
    %160 = vector.broadcast %cst_69 : f32 to vector<16x1xf32>
    %161 = arith.divf %159, %160 : vector<16x1xf32>
    %162 = vector.broadcast %154 : vector<16x1xf32> to vector<16x32xf32>
    %163 = arith.subf %148, %162 : vector<16x32xf32>
    %cst_70 = arith.constant 9.99999974E-6 : f32
    %164 = vector.broadcast %cst_70 : f32 to vector<16x1xf32>
    %165 = arith.addf %161, %164 : vector<16x1xf32>
    %166 = math.rsqrt %165 : vector<16x1xf32>
    %167 = vector.broadcast %166 : vector<16x1xf32> to vector<16x32xf32>
    %168 = arith.mulf %163, %167 : vector<16x32xf32>
    %169 = vector.broadcast %149 : vector<1x32xf32> to vector<16x32xf32>
    %170 = arith.mulf %168, %169 : vector<16x32xf32>
    %171 = vector.broadcast %150 : vector<1x32xf32> to vector<16x32xf32>
    %172 = arith.addf %170, %171 : vector<16x32xf32>
    %c0_71 = arith.constant 0 : index
    %c0_72 = arith.constant 0 : index
    %173 = vector.load %arg18[%c0_71, %c0_72] : memref<16x32xf32, #tpu.memory_space<vmem>>, vector<16x32xf32>
    tpu.vector_store %arg18[%c0_71, %c0_72], %172 {strides = array<i32>} : memref<16x32xf32, #tpu.memory_space<vmem>>, vector<16x32xf32>,
    return
  }
  func.func @transform_0(%arg0: i32) -> (i32, i32) {
    %c0_i32 = arith.constant 0 : i32
    %c0_i32_0 = arith.constant 0 : i32
    return %arg0, %c0_i32 : i32, i32
  }
  func.func @transform_1(%arg0: i32) -> (i32, i32) {
    %c0_i32 = arith.constant 0 : i32
    %c0_i32_0 = arith.constant 0 : i32
    %c0_i32_1 = arith.constant 0 : i32
    return %c0_i32, %c0_i32_0 : i32, i32
  }
  func.func @transform_2(%arg0: i32) -> (i32, i32) {
    %c0_i32 = arith.constant 0 : i32
    %c0_i32_0 = arith.constant 0 : i32
    %c0_i32_1 = arith.constant 0 : i32
    return %c0_i32, %c0_i32_0 : i32, i32
  }
  func.func @transform_3(%arg0: i32) -> (i32, i32) {
    %c0_i32 = arith.constant 0 : i32
    %c0_i32_0 = arith.constant 0 : i32
    %c0_i32_1 = arith.constant 0 : i32
    return %c0_i32, %c0_i32_0 : i32, i32
  }
  func.func @transform_4(%arg0: i32) -> (i32, i32) {
    %c0_i32 = arith.constant 0 : i32
    %c0_i32_0 = arith.constant 0 : i32
    %c0_i32_1 = arith.constant 0 : i32
    return %c0_i32, %c0_i32_0 : i32, i32
  }
  func.func @transform_5(%arg0: i32) -> (i32, i32) {
    %c0_i32 = arith.constant 0 : i32
    %c0_i32_0 = arith.constant 0 : i32
    %c0_i32_1 = arith.constant 0 : i32
    return %c0_i32, %c0_i32_0 : i32, i32
  }
  func.func @transform_6(%arg0: i32) -> (i32, i32) {
    %c0_i32 = arith.constant 0 : i32
    %c0_i32_0 = arith.constant 0 : i32
    %c0_i32_1 = arith.constant 0 : i32
    return %c0_i32, %c0_i32_0 : i32, i32
  }
  func.func @transform_7(%arg0: i32) -> (i32, i32) {
    %c0_i32 = arith.constant 0 : i32
    %c0_i32_0 = arith.constant 0 : i32
    %c0_i32_1 = arith.constant 0 : i32
    return %c0_i32, %c0_i32_0 : i32, i32
  }
  func.func @transform_8(%arg0: i32) -> (i32, i32) {
    %c0_i32 = arith.constant 0 : i32
    %c0_i32_0 = arith.constant 0 : i32
    %c0_i32_1 = arith.constant 0 : i32
    return %c0_i32, %c0_i32_0 : i32, i32
  }
  func.func @transform_9(%arg0: i32) -> (i32, i32) {
    %c0_i32 = arith.constant 0 : i32
    %c0_i32_0 = arith.constant 0 : i32
    %c0_i32_1 = arith.constant 0 : i32
    return %c0_i32, %c0_i32_0 : i32, i32
  }
  func.func @transform_10(%arg0: i32) -> (i32, i32) {
    %c0_i32 = arith.constant 0 : i32
    %c0_i32_0 = arith.constant 0 : i32
    %c0_i32_1 = arith.constant 0 : i32
    return %c0_i32, %c0_i32_0 : i32, i32
  }
  func.func @transform_11(%arg0: i32) -> (i32, i32) {
    %c0_i32 = arith.constant 0 : i32
    %c0_i32_0 = arith.constant 0 : i32
    %c0_i32_1 = arith.constant 0 : i32
    return %c0_i32, %c0_i32_0 : i32, i32
  }
  func.func @transform_12(%arg0: i32) -> (i32, i32) {
    %c0_i32 = arith.constant 0 : i32
    %c0_i32_0 = arith.constant 0 : i32
    %c0_i32_1 = arith.constant 0 : i32
    return %c0_i32, %c0_i32_0 : i32, i32
  }
  func.func @transform_13(%arg0: i32) -> (i32, i32) {
    %c0_i32 = arith.constant 0 : i32
    %c0_i32_0 = arith.constant 0 : i32
    %c0_i32_1 = arith.constant 0 : i32
    return %c0_i32, %c0_i32_0 : i32, i32
  }
  func.func @transform_14(%arg0: i32) -> (i32, i32) {
    %c0_i32 = arith.constant 0 : i32
    %c0_i32_0 = arith.constant 0 : i32
    %c0_i32_1 = arith.constant 0 : i32
    return %c0_i32, %c0_i32_0 : i32, i32
  }
  func.func @transform_15(%arg0: i32) -> (i32, i32) {
    %c0_i32 = arith.constant 0 : i32
    %c0_i32_0 = arith.constant 0 : i32
    %c0_i32_1 = arith.constant 0 : i32
    return %c0_i32, %c0_i32_0 : i32, i32
  }
  func.func @transform_16(%arg0: i32) -> (i32, i32) {
    %c0_i32 = arith.constant 0 : i32
    %c0_i32_0 = arith.constant 0 : i32
    %c0_i32_1 = arith.constant 0 : i32
    return %c0_i32, %c0_i32_0 : i32, i32
  }
  func.func @transform_17(%arg0: i32) -> (i32, i32) {
    %c0_i32 = arith.constant 0 : i32
    %c0_i32_0 = arith.constant 0 : i32
    return %arg0, %c0_i32 : i32, i32
  }
}

</mosaic_0001>

<llo_original>
// kernel: tpu_custom_call.1
$region0: #{tpu_custom_call.1}
  #allocation0 [shape = 'u32[]', space=smem, size = 0x4, offset = 0x4, fixed_abs, tag = 'smem constant byte address 0x4 - core index']
  #allocation1 [shape = 'u32[144,128]{1,0:T(1,128)}', space=vmem, size = 0x12000, scoped, tag = 'internal scratch']
  %s0 = inlined_call_operand.vmem [shape: f32[16,32], index: 0, kind: input, shape index: {}]
  %s1 = inlined_call_operand.vmem [shape: bf16[32,32], index: 1, kind: input, shape index: {}]
  %s2 = inlined_call_operand.vmem [shape: f32[1,32], index: 2, kind: input, shape index: {}]
  %s3 = inlined_call_operand.vmem [shape: bf16[32,32], index: 3, kind: input, shape index: {}]
  %s4 = inlined_call_operand.vmem [shape: f32[1,32], index: 4, kind: input, shape index: {}]
  %s5 = inlined_call_operand.vmem [shape: bf16[32,32], index: 5, kind: input, shape index: {}]
  %s6 = inlined_call_operand.vmem [shape: f32[1,32], index: 6, kind: input, shape index: {}]
  %s7 = inlined_call_operand.vmem [shape: bf16[32,32], index: 7, kind: input, shape index: {}]
  %s8 = inlined_call_operand.vmem [shape: f32[1,32], index: 8, kind: input, shape index: {}]
  %s9 = inlined_call_operand.vmem [shape: f32[1,32], index: 9, kind: input, shape index: {}]
  %s10 = inlined_call_operand.vmem [shape: f32[1,32], index: 10, kind: input, shape index: {}]
  %s11 = inlined_call_operand.hbm [shape: bf16[32,128], index: 11, kind: input, shape index: {}]
  %s12 = inlined_call_operand.vmem [shape: f32[1,128], index: 12, kind: input, shape index: {}]
  %s13 = inlined_call_operand.vmem [shape: bf16[128,32], index: 13, kind: input, shape index: {}]
  %s14 = inlined_call_operand.vmem [shape: f32[1,32], index: 14, kind: input, shape index: {}]
  %s15 = inlined_call_operand.vmem [shape: f32[1,32], index: 15, kind: input, shape index: {}]
  %s16 = inlined_call_operand.vmem [shape: f32[1,32], index: 16, kind: input, shape index: {}]
  %s17 = inlined_call_operand.hbm [shape: f32[16,32], index: 17, kind: output, shape index: {}]
  %s18 = sld [smem:[#allocation0]]
  $region82: #{tpu_custom_call.1} parent=0
    _
  %s20 = ssub.s32 1, %s18
  %s21 = scalar_select 0, %s20, %s18
  $region1: #{tpu_custom_call.1} parent=0
    #allocation2 [shape = 'u8[8192]{0}', space=vmem, size = 0x2000, scoped, tag = 'input window, operand 11, single buffered']
    #allocation3 [shape = 's32[1]{0}', space=sflag, size = 0x4, scoped, tag = 'scoped memory for tpu_custom_call.1']
    #allocation4 [shape = 's32[1]{0}', space=sflag, size = 0x4, scoped, tag = 'scoped memory for tpu_custom_call.1']
    #allocation5 [shape = 'u8[8192]{0}', space=vmem, size = 0x2000, scoped, tag = 'output window, operand 0, single buffered']
    %22 = vsyncpa [#allocation3], 0
    %23 = vsyncpa [#allocation4], 0
    // Predicated region
    $region2: #{tpu_custom_call.1} parent=1 // pred_check
      _
    $region3: #{tpu_custom_call.1} parent=1 // pred_check_branch
      %25 = sbr.rel (0) target = $region5
    $region4: #{tpu_custom_call.1} parent=1 // pred_region
      _
    $region5: #{tpu_custom_call.1} parent=1 // pred_fallthru
      _
    // Predicated region
    $region6: #{tpu_custom_call.1} parent=1 // pred_check
      _
    $region7: #{tpu_custom_call.1} parent=1 // pred_check_branch
      %27 = sbr.rel (0) target = $region9
    $region8: #{tpu_custom_call.1} parent=1 // pred_region
      _
    $region9: #{tpu_custom_call.1} parent=1 // pred_fallthru
      _
    // Predicated region
    $region10: #{tpu_custom_call.1} parent=1 // pred_check
      _
    $region11: #{tpu_custom_call.1} parent=1 // pred_check_branch
      %29 = sbr.rel (0) target = $region13
    $region12: #{tpu_custom_call.1} parent=1 // pred_region
      _
    $region13: #{tpu_custom_call.1} parent=1 // pred_fallthru
      _
    // Predicated region
    $region14: #{tpu_custom_call.1} parent=1 // pred_check
      _
    $region15: #{tpu_custom_call.1} parent=1 // pred_check_branch
      %31 = sbr.rel (0) target = $region17
    $region16: #{tpu_custom_call.1} parent=1 // pred_region
      _
    $region17: #{tpu_custom_call.1} parent=1 // pred_fallthru
      _
    // Predicated region
    $region18: #{tpu_custom_call.1} parent=1 // pred_check
      _
    $region19: #{tpu_custom_call.1} parent=1 // pred_check_branch
      %33 = sbr.rel (0) target = $region21
    $region20: #{tpu_custom_call.1} parent=1 // pred_region
      _
    $region21: #{tpu_custom_call.1} parent=1 // pred_fallthru
      _
    // Predicated region
    $region22: #{tpu_custom_call.1} parent=1 // pred_check
      _
    $region23: #{tpu_custom_call.1} parent=1 // pred_check_branch
      %35 = sbr.rel (0) target = $region25
    $region24: #{tpu_custom_call.1} parent=1 // pred_region
      _
    $region25: #{tpu_custom_call.1} parent=1 // pred_fallthru
      _
    // Predicated region
    $region26: #{tpu_custom_call.1} parent=1 // pred_check
      _
    $region27: #{tpu_custom_call.1} parent=1 // pred_check_branch
      %37 = sbr.rel (0) target = $region29
    $region28: #{tpu_custom_call.1} parent=1 // pred_region
      _
    $region29: #{tpu_custom_call.1} parent=1 // pred_fallthru
      _
    // Predicated region
    $region30: #{tpu_custom_call.1} parent=1 // pred_check
      _
    $region31: #{tpu_custom_call.1} parent=1 // pred_check_branch
      %39 = sbr.rel (0) target = $region33
    $region32: #{tpu_custom_call.1} parent=1 // pred_region
      _
    $region33: #{tpu_custom_call.1} parent=1 // pred_fallthru
      _
    // Predicated region
    $region34: #{tpu_custom_call.1} parent=1 // pred_check
      _
    $region35: #{tpu_custom_call.1} parent=1 // pred_check_branch
      %41 = sbr.rel (0) target = $region37
    $region36: #{tpu_custom_call.1} parent=1 // pred_region
      _
    $region37: #{tpu_custom_call.1} parent=1 // pred_fallthru
      _
    // Predicated region
    $region38: #{tpu_custom_call.1} parent=1 // pred_check
      _
    $region39: #{tpu_custom_call.1} parent=1 // pred_check_branch
      %43 = sbr.rel (0) target = $region41
    $region40: #{tpu_custom_call.1} parent=1 // pred_region
      _
    $region41: #{tpu_custom_call.1} parent=1 // pred_fallthru
      _
    // Predicated region
    $region42: #{tpu_custom_call.1} parent=1 // pred_check
      _
    $region43: #{tpu_custom_call.1} parent=1 // pred_check_branch
      %45 = sbr.rel (0) target = $region45
    $region44: #{tpu_custom_call.1} parent=1 // pred_region
      _
    $region45: #{tpu_custom_call.1} parent=1 // pred_fallthru
      _
    // Predicated region
    $region46: #{tpu_custom_call.1} parent=1 // pred_check
      _
    $region47: #{tpu_custom_call.1} parent=1 // pred_check_branch
      %47 = sbr.rel (0) target = $region49
    $region48: #{tpu_custom_call.1} parent=1 // pred_region
      %s49 = ssub.s32 256, 256
      %50 = vsyncadd [#allocation3], %s49
      %s51 = sshll.u32 [#allocation2], 4
      %s52 = int_to_ptr.vmem [resolvable:$true] %s51
      %57 = dma.hbm_to_vmem [thread:$0]  %s11, 256, %s52, [#allocation3], 64, 64, 4
    $region49: #{tpu_custom_call.1} parent=1 // pred_fallthru
      _
    // Predicated region
    $region50: #{tpu_custom_call.1} parent=1 // pred_check
      _
    $region51: #{tpu_custom_call.1} parent=1 // pred_check_branch
      %59 = sbr.rel (0) target = $region53
    $region52: #{tpu_custom_call.1} parent=1 // pred_region
      _
    $region53: #{tpu_custom_call.1} parent=1 // pred_fallthru
      _
    // Predicated region
    $region54: #{tpu_custom_call.1} parent=1 // pred_check
      _
    $region55: #{tpu_custom_call.1} parent=1 // pred_check_branch
      %61 = sbr.rel (0) target = $region57
    $region56: #{tpu_custom_call.1} parent=1 // pred_region
      _
    $region57: #{tpu_custom_call.1} parent=1 // pred_fallthru
      _
    // Predicated region
    $region58: #{tpu_custom_call.1} parent=1 // pred_check
      _
    $region59: #{tpu_custom_call.1} parent=1 // pred_check_branch
      %63 = sbr.rel (0) target = $region61
    $region60: #{tpu_custom_call.1} parent=1 // pred_region
      _
    $region61: #{tpu_custom_call.1} parent=1 // pred_fallthru
      _
    // Predicated region
    $region62: #{tpu_custom_call.1} parent=1 // pred_check
      _
    $region63: #{tpu_custom_call.1} parent=1 // pred_check_branch
      %65 = sbr.rel (0) target = $region65
    $region64: #{tpu_custom_call.1} parent=1 // pred_region
      _
    $region65: #{tpu_custom_call.1} parent=1 // pred_fallthru
      _
    // Predicated region
    $region66: #{tpu_custom_call.1} parent=1 // pred_check
      _
    $region67: #{tpu_custom_call.1} parent=1 // pred_check_branch
      %67 = sbr.rel (0) target = $region69
    $region68: #{tpu_custom_call.1} parent=1 // pred_region
      _
    $region69: #{tpu_custom_call.1} parent=1 // pred_fallthru
      _
    // Predicated region
    $region70: #{tpu_custom_call.1} parent=1 // pred_check
      _
    $region71: #{tpu_custom_call.1} parent=1 // pred_check_branch
      %69 = sbr.rel (0) target = $region73
    $region72: #{tpu_custom_call.1} parent=1 // pred_region
      %70 = dma.done [#allocation3], 256
    $region73: #{tpu_custom_call.1} parent=1 // pred_fallthru
      _
    %v72 = vld [vmem:[%s0] sm:$0xff]
    %v73 = vld [vmem:[%s0 + $0x8] sm:$0xff]
    %v74 = vpack.c.bf16 %v73, %v72
    %v75 = vld [vmem:[%s1] sm:$0xf]
    %v76 = vld [vmem:[%s1 + $0x4] sm:$0xf]
    %v77 = vld [vmem:[%s1 + $0x8] sm:$0xf]
    %v78 = vld [vmem:[%s1 + $0xc] sm:$0xf]
    %v79 = vld [vmem:[%s2] sm:$0x1]
    %v81 = vlaneseq
    %v82 = vshrl.u32 %v81, 7
    %v83 = vsub.s32 0, %v82
    %v84 = vrot.slane %v79, %v83
    %v90 = vunpack.c.l.b16 %v75
    %v91 = vunpack.c.l.b16 %v76
    %v92 = vunpack.c.l.b16 %v77
    %v93 = vunpack.c.l.b16 %v78
    %v94 = vpack.c.b16 %v91, %v90
    %v95 = vpack.c.b16 %v93, %v92
    %vm98 = vcmask 261120
    %v100 = vsel %vm98, %v74, 0
    %102 = vmatprep.subr.bf16.mxu0 0
    %103 = vmatpush1.bf16.msra.mxu0 0
    %104 = vmatprep.subr.bf16.mxu0 0
    %105 = vmatpush1.bf16.msra.mxu0 0
    %106 = vmatprep.subr.bf16.mxu0 0
    %107 = vmatpush1.bf16.msra.mxu0 0
    %108 = vmatprep.subr.bf16.mxu0 0
    %109 = vmatpush1.bf16.msra.mxu0 0
    %110 = vmatprep.subr.bf16.mxu0 0
    %111 = vmatpush1.bf16.msra.mxu0 0
    %112 = vmatprep.subr.bf16.mxu0 0
    %113 = vmatpush1.bf16.msra.mxu0 0
    %114 = vmatprep.subr.bf16.mxu0 0
    %115 = vmatpush1.bf16.msra.mxu0 %v95
    %116 = vmatprep.subr.bf16.mxu0 0
    %117 = vmatpush1.bf16.msra.mxu0 %v94
    %118 = vmatprep.subr.bf16.mxu0 0
    %119 = vmatpush2.bf16.msra.mxu0 0
    %120 = vmatprep.subr.bf16.mxu0 0
    %121 = vmatpush2.bf16.msra.mxu0 0
    %122 = vmatprep.subr.bf16.mxu0 0
    %123 = vmatpush2.bf16.msra.mxu0 0
    %124 = vmatprep.subr.bf16.mxu0 0
    %125 = vmatpush2.bf16.msra.mxu0 0
    %126 = vmatprep.subr.bf16.mxu0 0
    %127 = vmatpush2.bf16.msra.mxu0 0
    %128 = vmatprep.subr.bf16.mxu0 0
    %129 = vmatpush2.bf16.msra.mxu0 0
    %130 = vmatprep.subr.bf16.mxu0 0
    %131 = vmatpush2.bf16.msra.mxu0 0
    %132 = vmatprep.subr.bf16.mxu0 0
    %133 = vmatpush2.bf16.msra.mxu0 0
    %134 = vmatprep.mubr.bf16.mxu0 0
    %135 = vmatmul.mubr.bf16.gmra.mxu0 %v100
    %v136 = vpop.f32.mrf.mxu0
    %v137 = vadd.f32 %v84, %v136
    %v138 = vpop.f32.mrf.mxu0
    %v139 = vpop.f32.mrf.mxu0
    %v140 = vadd.f32 %v84, %v139
    %v141 = vpop.f32.mrf.mxu0
    %142 = vdwg.mxu0
    %v143 = vld [vmem:[%s3] sm:$0xf]
    %v144 = vld [vmem:[%s3 + $0x4] sm:$0xf]
    %v145 = vld [vmem:[%s3 + $0x8] sm:$0xf]
    %v146 = vld [vmem:[%s3 + $0xc] sm:$0xf]
    %v147 = vld [vmem:[%s4] sm:$0x1]
    %v149 = vlaneseq
    %v150 = vshrl.u32 %v149, 7
    %v151 = vsub.s32 0, %v150
    %v152 = vrot.slane %v147, %v151
    %v158 = vunpack.c.l.b16 %v143
    %v159 = vunpack.c.l.b16 %v144
    %v160 = vunpack.c.l.b16 %v145
    %v161 = vunpack.c.l.b16 %v146
    %v162 = vpack.c.b16 %v159, %v158
    %v163 = vpack.c.b16 %v161, %v160
    %166 = vmatprep.subr.bf16.mxu0 0
    %167 = vmatpush1.bf16.msra.mxu0 0
    %168 = vmatprep.subr.bf16.mxu0 0
    %169 = vmatpush1.bf16.msra.mxu0 0
    %170 = vmatprep.subr.bf16.mxu0 0
    %171 = vmatpush1.bf16.msra.mxu0 0
    %172 = vmatprep.subr.bf16.mxu0 0
    %173 = vmatpush1.bf16.msra.mxu0 0
    %174 = vmatprep.subr.bf16.mxu0 0
    %175 = vmatpush1.bf16.msra.mxu0 0
    %176 = vmatprep.subr.bf16.mxu0 0
    %177 = vmatpush1.bf16.msra.mxu0 0
    %178 = vmatprep.subr.bf16.mxu0 0
    %179 = vmatpush1.bf16.msra.mxu0 %v163
    %180 = vmatprep.subr.bf16.mxu0 0
    %181 = vmatpush1.bf16.msra.mxu0 %v162
    %182 = vmatprep.subr.bf16.mxu0 0
    %183 = vmatpush2.bf16.msra.mxu0 0
    %184 = vmatprep.subr.bf16.mxu0 0
    %185 = vmatpush2.bf16.msra.mxu0 0
    %186 = vmatprep.subr.bf16.mxu0 0
    %187 = vmatpush2.bf16.msra.mxu0 0
    %188 = vmatprep.subr.bf16.mxu0 0
    %189 = vmatpush2.bf16.msra.mxu0 0
    %190 = vmatprep.subr.bf16.mxu0 0
    %191 = vmatpush2.bf16.msra.mxu0 0
    %192 = vmatprep.subr.bf16.mxu0 0
    %193 = vmatpush2.bf16.msra.mxu0 0
    %194 = vmatprep.subr.bf16.mxu0 0
    %195 = vmatpush2.bf16.msra.mxu0 0
    %196 = vmatprep.subr.bf16.mxu0 0
    %197 = vmatpush2.bf16.msra.mxu0 0
    %198 = vmatprep.mubr.bf16.mxu0 0
    %199 = vmatmul.mubr.bf16.gmra.mxu0 %v100
    %v200 = vpop.f32.mrf.mxu0
    %v201 = vadd.f32 %v152, %v200
    %v202 = vpop.f32.mrf.mxu0
    %v203 = vpop.f32.mrf.mxu0
    %v204 = vadd.f32 %v152, %v203
    %v205 = vpop.f32.mrf.mxu0
    %206 = vdwg.mxu0
    %v207 = vld [vmem:[%s5] sm:$0xf]
    %v208 = vld [vmem:[%s5 + $0x4] sm:$0xf]
    %v209 = vld [vmem:[%s5 + $0x8] sm:$0xf]
    %v210 = vld [vmem:[%s5 + $0xc] sm:$0xf]
    %v211 = vld [vmem:[%s6] sm:$0x1]
    %v213 = vlaneseq
    %v214 = vshrl.u32 %v213, 7
    %v215 = vsub.s32 0, %v214
    %v216 = vrot.slane %v211, %v215
    %v222 = vunpack.c.l.b16 %v207
    %v223 = vunpack.c.l.b16 %v208
    %v224 = vunpack.c.l.b16 %v209
    %v225 = vunpack.c.l.b16 %v210
    %v226 = vpack.c.b16 %v223, %v222
    %v227 = vpack.c.b16 %v225, %v224
    %230 = vmatprep.subr.bf16.mxu0 0
    %231 = vmatpush1.bf16.msra.mxu0 0
    %232 = vmatprep.subr.bf16.mxu0 0
    %233 = vmatpush1.bf16.msra.mxu0 0
    %234 = vmatprep.subr.bf16.mxu0 0
    %235 = vmatpush1.bf16.msra.mxu0 0
    %236 = vmatprep.subr.bf16.mxu0 0
    %237 = vmatpush1.bf16.msra.mxu0 0
    %238 = vmatprep.subr.bf16.mxu0 0
    %239 = vmatpush1.bf16.msra.mxu0 0
    %240 = vmatprep.subr.bf16.mxu0 0
    %241 = vmatpush1.bf16.msra.mxu0 0
    %242 = vmatprep.subr.bf16.mxu0 0
    %243 = vmatpush1.bf16.msra.mxu0 %v227
    %244 = vmatprep.subr.bf16.mxu0 0
    %245 = vmatpush1.bf16.msra.mxu0 %v226
    %246 = vmatprep.subr.bf16.mxu0 0
    %247 = vmatpush2.bf16.msra.mxu0 0
    %248 = vmatprep.subr.bf16.mxu0 0
    %249 = vmatpush2.bf16.msra.mxu0 0
    %250 = vmatprep.subr.bf16.mxu0 0
    %251 = vmatpush2.bf16.msra.mxu0 0
    %252 = vmatprep.subr.bf16.mxu0 0
    %253 = vmatpush2.bf16.msra.mxu0 0
    %254 = vmatprep.subr.bf16.mxu0 0
    %255 = vmatpush2.bf16.msra.mxu0 0
    %256 = vmatprep.subr.bf16.mxu0 0
    %257 = vmatpush2.bf16.msra.mxu0 0
    %258 = vmatprep.subr.bf16.mxu0 0
    %259 = vmatpush2.bf16.msra.mxu0 0
    %260 = vmatprep.subr.bf16.mxu0 0
    %261 = vmatpush2.bf16.msra.mxu0 0
    %262 = vmatprep.mubr.bf16.mxu0 0
    %263 = vmatmul.mubr.bf16.gmra.mxu0 %v100
    %v264 = vpop.f32.mrf.mxu0
    %v265 = vadd.f32 %v216, %v264
    %v266 = vpop.f32.mrf.mxu0
    %v267 = vpop.f32.mrf.mxu0
    %v268 = vadd.f32 %v216, %v267
    %v269 = vpop.f32.mrf.mxu0
    %270 = vdwg.mxu0
    %v271 = vpack.c.bf16 %v140, %v137
    %v273 = vunpack.c.l.b16 %v271
    %v274 = vunpack.c.h.b16 %v271
    %v275 = vpack.c.b16 %v273, %v273
    %v276 = vpack.c.b16 %v274, %v274
    %v277 = vpack.c.bf16 %v204, %v201
    %v279 = vunpack.c.l.b16 %v277
    %v280 = vunpack.c.h.b16 %v277
    %v281 = vpack.c.b16 %v279, %v279
    %v282 = vpack.c.b16 %v280, %v280
    %v283 = vpack.c.bf16 %v268, %v265
    %v285 = vunpack.c.l.b16 %v283
    %v286 = vunpack.c.h.b16 %v283
    %v287 = vpack.c.b16 %v285, %v285
    %v288 = vpack.c.b16 %v286, %v286
    %vm289 = vcmask 64512
    %v291 = vsel %vm289, %v275, 0
    %v294 = vsel %vm289, %v281, 0
    %296 = vmatprep.subr.bf16.mxu0 0
    %297 = vmatpush1.bf16.xpose.msra.mxu0 0
    %298 = vmatprep.subr.bf16.mxu0 0
    %299 = vmatpush1.bf16.xpose.msra.mxu0 0
    %300 = vmatprep.subr.bf16.mxu0 0
    %301 = vmatpush1.bf16.xpose.msra.mxu0 0
    %302 = vmatprep.subr.bf16.mxu0 0
    %303 = vmatpush1.bf16.xpose.msra.mxu0 0
    %304 = vmatprep.subr.bf16.mxu0 0
    %305 = vmatpush1.bf16.xpose.msra.mxu0 0
    %306 = vmatprep.subr.bf16.mxu0 0
    %307 = vmatpush1.bf16.xpose.msra.mxu0 0
    %308 = vmatprep.subr.bf16.mxu0 0
    %309 = vmatpush1.bf16.xpose.msra.mxu0 0
    %310 = vmatprep.subr.bf16.mxu0 0
    %311 = vmatpush1.bf16.xpose.msra.mxu0 %v294
    %312 = vmatprep.subr.bf16.mxu0 0
    %313 = vmatpush2.bf16.xpose.msra.mxu0 0
    %314 = vmatprep.subr.bf16.mxu0 0
    %315 = vmatpush2.bf16.xpose.msra.mxu0 0
    %316 = vmatprep.subr.bf16.mxu0 0
    %317 = vmatpush2.bf16.xpose.msra.mxu0 0
    %318 = vmatprep.subr.bf16.mxu0 0
    %319 = vmatpush2.bf16.xpose.msra.mxu0 0
    %320 = vmatprep.subr.bf16.mxu0 0
    %321 = vmatpush2.bf16.xpose.msra.mxu0 0
    %322 = vmatprep.subr.bf16.mxu0 0
    %323 = vmatpush2.bf16.xpose.msra.mxu0 0
    %324 = vmatprep.subr.bf16.mxu0 0
    %325 = vmatpush2.bf16.xpose.msra.mxu0 0
    %326 = vmatprep.subr.bf16.mxu0 0
    %327 = vmatpush2.bf16.xpose.msra.mxu0 0
    %328 = vmatprep.mubr.bf16.mxu0 0
    %329 = vmatmul.mubr.bf16.gmra.mxu0 %v291
    %v330 = vpop.f32.mrf.mxu0
    %v331 = vadd.f32 0.0, %v330
    %v332 = vpop.f32.mrf.mxu0
    %v333 = vpop.f32.mrf.mxu0
    %v334 = vpop.f32.mrf.mxu0
    %335 = vdwg.mxu0
    %v337 = vsel %vm289, %v276, 0
    %v340 = vsel %vm289, %v282, 0
    %342 = vmatprep.subr.bf16.mxu0 0
    %343 = vmatpush1.bf16.xpose.msra.mxu0 0
    %344 = vmatprep.subr.bf16.mxu0 0
    %345 = vmatpush1.bf16.xpose.msra.mxu0 0
    %346 = vmatprep.subr.bf16.mxu0 0
    %347 = vmatpush1.bf16.xpose.msra.mxu0 0
    %348 = vmatprep.subr.bf16.mxu0 0
    %349 = vmatpush1.bf16.xpose.msra.mxu0 0
    %350 = vmatprep.subr.bf16.mxu0 0
    %351 = vmatpush1.bf16.xpose.msra.mxu0 0
    %352 = vmatprep.subr.bf16.mxu0 0
    %353 = vmatpush1.bf16.xpose.msra.mxu0 0
    %354 = vmatprep.subr.bf16.mxu0 0
    %355 = vmatpush1.bf16.xpose.msra.mxu0 0
    %356 = vmatprep.subr.bf16.mxu0 0
    %357 = vmatpush1.bf16.xpose.msra.mxu0 %v340
    %358 = vmatprep.subr.bf16.mxu0 0
    %359 = vmatpush2.bf16.xpose.msra.mxu0 0
    %360 = vmatprep.subr.bf16.mxu0 0
    %361 = vmatpush2.bf16.xpose.msra.mxu0 0
    %362 = vmatprep.subr.bf16.mxu0 0
    %363 = vmatpush2.bf16.xpose.msra.mxu0 0
    %364 = vmatprep.subr.bf16.mxu0 0
    %365 = vmatpush2.bf16.xpose.msra.mxu0 0
    %366 = vmatprep.subr.bf16.mxu0 0
    %367 = vmatpush2.bf16.xpose.msra.mxu0 0
    %368 = vmatprep.subr.bf16.mxu0 0
    %369 = vmatpush2.bf16.xpose.msra.mxu0 0
    %370 = vmatprep.subr.bf16.mxu0 0
    %371 = vmatpush2.bf16.xpose.msra.mxu0 0
    %372 = vmatprep.subr.bf16.mxu0 0
    %373 = vmatpush2.bf16.xpose.msra.mxu0 0
    %374 = vmatprep.mubr.bf16.mxu0 0
    %375 = vmatmul.mubr.bf16.gmra.mxu0 %v337
    %v376 = vpop.f32.mrf.mxu0
    %v377 = vadd.f32 0.0, %v376
    %v378 = vpop.f32.mrf.mxu0
    %v379 = vpop.f32.mrf.mxu0
    %v380 = vpop.f32.mrf.mxu0
    %381 = vdwg.mxu0
    %v382 = vmul.f32 %v331, 0.35355338
    %v383 = vmul.f32 %v377, 0.35355338
    %v384 = vsel %vm289, %v382, -inf
    %385 = vmax.xlane.f32.xlu0 %v384
    %v386 = vpop.xlane.xlu0 %385
    %v387 = vsel %vm289, %v383, -inf
    %388 = vmax.xlane.f32.xlu0 %v387
    %v389 = vpop.xlane.xlu0 %388
    %v390 = vsub.f32 %v382, %v386
    %v391 = vsub.f32 %v383, %v389
    %v392 = vmul.f32 %v390, 1.442695
    %v393 = vpow.pop %v392
    %v394 = vmul.f32 %v391, 1.442695
    %v395 = vpow.pop %v394
    %v396 = vsel %vm289, %v393, 0.0
    %397 = vadd.xlane.f32.xlu0 %v396
    %v398 = vpop.xlane.xlu0 %397
    %v399 = vsel %vm289, %v395, 0.0
    %400 = vadd.xlane.f32.xlu0 %v399
    %v401 = vpop.xlane.xlu0 %400
    %v402 = vrcp.pop %v398
    %v403 = vrcp.pop %v401
    %v404 = vmul.f32 %v393, %v402
    %v405 = vmul.f32 %v395, %v403
    %v406 = vpack.c.bf16 %v404, %v404
    %v407 = vpack.c.bf16 %v405, %v405
    %v409 = vsel %vm289, %v406, 0
    %vm411 = vcmask 1043456
    %v413 = vsel %vm411, %v287, 0
    %415 = vmatprep.subr.bf16.mxu0 0
    %416 = vmatpush1.bf16.msra.mxu0 0
    %417 = vmatprep.subr.bf16.mxu0 0
    %418 = vmatpush1.bf16.msra.mxu0 0
    %419 = vmatprep.subr.bf16.mxu0 0
    %420 = vmatpush1.bf16.msra.mxu0 0
    %421 = vmatprep.subr.bf16.mxu0 0
    %422 = vmatpush1.bf16.msra.mxu0 0
    %423 = vmatprep.subr.bf16.mxu0 0
    %424 = vmatpush1.bf16.msra.mxu0 0
    %425 = vmatprep.subr.bf16.mxu0 0
    %426 = vmatpush1.bf16.msra.mxu0 0
    %427 = vmatprep.subr.bf16.mxu0 0
    %428 = vmatpush1.bf16.msra.mxu0 0
    %429 = vmatprep.subr.bf16.mxu0 0
    %430 = vmatpush1.bf16.msra.mxu0 %v413
    %431 = vmatprep.subr.bf16.mxu0 0
    %432 = vmatpush2.bf16.msra.mxu0 0
    %433 = vmatprep.subr.bf16.mxu0 0
    %434 = vmatpush2.bf16.msra.mxu0 0
    %435 = vmatprep.subr.bf16.mxu0 0
    %436 = vmatpush2.bf16.msra.mxu0 0
    %437 = vmatprep.subr.bf16.mxu0 0
    %438 = vmatpush2.bf16.msra.mxu0 0
    %439 = vmatprep.subr.bf16.mxu0 0
    %440 = vmatpush2.bf16.msra.mxu0 0
    %441 = vmatprep.subr.bf16.mxu0 0
    %442 = vmatpush2.bf16.msra.mxu0 0
    %443 = vmatprep.subr.bf16.mxu0 0
    %444 = vmatpush2.bf16.msra.mxu0 0
    %445 = vmatprep.subr.bf16.mxu0 0
    %446 = vmatpush2.bf16.msra.mxu0 0
    %447 = vmatprep.mubr.bf16.mxu0 0
    %448 = vmatmul.mubr.bf16.gmra.mxu0 %v409
    %v449 = vpop.f32.mrf.mxu0
    %v450 = vadd.f32 0.0, %v449
    %v451 = vpop.f32.mrf.mxu0
    %v452 = vpop.f32.mrf.mxu0
    %v453 = vpop.f32.mrf.mxu0
    %454 = vdwg.mxu0
    %v456 = vsel %vm289, %v407, 0
    %v459 = vsel %vm411, %v288, 0
    %461 = vmatprep.subr.bf16.mxu0 0
    %462 = vmatpush1.bf16.msra.mxu0 0
    %463 = vmatprep.subr.bf16.mxu0 0
    %464 = vmatpush1.bf16.msra.mxu0 0
    %465 = vmatprep.subr.bf16.mxu0 0
    %466 = vmatpush1.bf16.msra.mxu0 0
    %467 = vmatprep.subr.bf16.mxu0 0
    %468 = vmatpush1.bf16.msra.mxu0 0
    %469 = vmatprep.subr.bf16.mxu0 0
    %470 = vmatpush1.bf16.msra.mxu0 0
    %471 = vmatprep.subr.bf16.mxu0 0
    %472 = vmatpush1.bf16.msra.mxu0 0
    %473 = vmatprep.subr.bf16.mxu0 0
    %474 = vmatpush1.bf16.msra.mxu0 0
    %475 = vmatprep.subr.bf16.mxu0 0
    %476 = vmatpush1.bf16.msra.mxu0 %v459
    %477 = vmatprep.subr.bf16.mxu0 0
    %478 = vmatpush2.bf16.msra.mxu0 0
    %479 = vmatprep.subr.bf16.mxu0 0
    %480 = vmatpush2.bf16.msra.mxu0 0
    %481 = vmatprep.subr.bf16.mxu0 0
    %482 = vmatpush2.bf16.msra.mxu0 0
    %483 = vmatprep.subr.bf16.mxu0 0
    %484 = vmatpush2.bf16.msra.mxu0 0
    %485 = vmatprep.subr.bf16.mxu0 0
    %486 = vmatpush2.bf16.msra.mxu0 0
    %487 = vmatprep.subr.bf16.mxu0 0
    %488 = vmatpush2.bf16.msra.mxu0 0
    %489 = vmatprep.subr.bf16.mxu0 0
    %490 = vmatpush2.bf16.msra.mxu0 0
    %491 = vmatprep.subr.bf16.mxu0 0
    %492 = vmatpush2.bf16.msra.mxu0 0
    %493 = vmatprep.mubr.bf16.mxu0 0
    %494 = vmatmul.mubr.bf16.gmra.mxu0 %v456
    %v495 = vpop.f32.mrf.mxu0
    %v496 = vadd.f32 0.0, %v495
    %v497 = vpop.f32.mrf.mxu0
    %v498 = vpop.f32.mrf.mxu0
    %v499 = vpop.f32.mrf.mxu0
    %500 = vdwg.mxu0
    %501 = vrot.lane.b32.xlu0 %v275, 120
    %v502 = vpop.permute.xlu0 %501
    %503 = vrot.lane.b32.xlu0 %v281, 120
    %v504 = vpop.permute.xlu0 %503
    %v506 = vsel %vm289, %v502, 0
    %v509 = vsel %vm289, %v504, 0
    %511 = vmatprep.subr.bf16.mxu0 0
    %512 = vmatpush1.bf16.xpose.msra.mxu0 0
    %513 = vmatprep.subr.bf16.mxu0 0
    %514 = vmatpush1.bf16.xpose.msra.mxu0 0
    %515 = vmatprep.subr.bf16.mxu0 0
    %516 = vmatpush1.bf16.xpose.msra.mxu0 0
    %517 = vmatprep.subr.bf16.mxu0 0
    %518 = vmatpush1.bf16.xpose.msra.mxu0 0
    %519 = vmatprep.subr.bf16.mxu0 0
    %520 = vmatpush1.bf16.xpose.msra.mxu0 0
    %521 = vmatprep.subr.bf16.mxu0 0
    %522 = vmatpush1.bf16.xpose.msra.mxu0 0
    %523 = vmatprep.subr.bf16.mxu0 0
    %524 = vmatpush1.bf16.xpose.msra.mxu0 0
    %525 = vmatprep.subr.bf16.mxu0 0
    %526 = vmatpush1.bf16.xpose.msra.mxu0 %v509
    %527 = vmatprep.subr.bf16.mxu0 0
    %528 = vmatpush2.bf16.xpose.msra.mxu0 0
    %529 = vmatprep.subr.bf16.mxu0 0
    %530 = vmatpush2.bf16.xpose.msra.mxu0 0
    %531 = vmatprep.subr.bf16.mxu0 0
    %532 = vmatpush2.bf16.xpose.msra.mxu0 0
    %533 = vmatprep.subr.bf16.mxu0 0
    %534 = vmatpush2.bf16.xpose.msra.mxu0 0
    %535 = vmatprep.subr.bf16.mxu0 0
    %536 = vmatpush2.bf16.xpose.msra.mxu0 0
    %537 = vmatprep.subr.bf16.mxu0 0
    %538 = vmatpush2.bf16.xpose.msra.mxu0 0
    %539 = vmatprep.subr.bf16.mxu0 0
    %540 = vmatpush2.bf16.xpose.msra.mxu0 0
    %541 = vmatprep.subr.bf16.mxu0 0
    %542 = vmatpush2.bf16.xpose.msra.mxu0 0
    %543 = vmatprep.mubr.bf16.mxu0 0
    %544 = vmatmul.mubr.bf16.gmra.mxu0 %v506
    %v545 = vpop.f32.mrf.mxu0
    %v546 = vadd.f32 0.0, %v545
    %v547 = vpop.f32.mrf.mxu0
    %v548 = vpop.f32.mrf.mxu0
    %v549 = vpop.f32.mrf.mxu0
    %550 = vdwg.mxu0
    %551 = vrot.lane.b32.xlu0 %v276, 120
    %v552 = vpop.permute.xlu0 %551
    %553 = vrot.lane.b32.xlu0 %v282, 120
    %v554 = vpop.permute.xlu0 %553
    %v556 = vsel %vm289, %v552, 0
    %v559 = vsel %vm289, %v554, 0
    %561 = vmatprep.subr.bf16.mxu0 0
    %562 = vmatpush1.bf16.xpose.msra.mxu0 0
    %563 = vmatprep.subr.bf16.mxu0 0
    %564 = vmatpush1.bf16.xpose.msra.mxu0 0
    %565 = vmatprep.subr.bf16.mxu0 0
    %566 = vmatpush1.bf16.xpose.msra.mxu0 0
    %567 = vmatprep.subr.bf16.mxu0 0
    %568 = vmatpush1.bf16.xpose.msra.mxu0 0
    %569 = vmatprep.subr.bf16.mxu0 0
    %570 = vmatpush1.bf16.xpose.msra.mxu0 0
    %571 = vmatprep.subr.bf16.mxu0 0
    %572 = vmatpush1.bf16.xpose.msra.mxu0 0
    %573 = vmatprep.subr.bf16.mxu0 0
    %574 = vmatpush1.bf16.xpose.msra.mxu0 0
    %575 = vmatprep.subr.bf16.mxu0 0
    %576 = vmatpush1.bf16.xpose.msra.mxu0 %v559
    %577 = vmatprep.subr.bf16.mxu0 0
    %578 = vmatpush2.bf16.xpose.msra.mxu0 0
    %579 = vmatprep.subr.bf16.mxu0 0
    %580 = vmatpush2.bf16.xpose.msra.mxu0 0
    %581 = vmatprep.subr.bf16.mxu0 0
    %582 = vmatpush2.bf16.xpose.msra.mxu0 0
    %583 = vmatprep.subr.bf16.mxu0 0
    %584 = vmatpush2.bf16.xpose.msra.mxu0 0
    %585 = vmatprep.subr.bf16.mxu0 0
    %586 = vmatpush2.bf16.xpose.msra.mxu0 0
    %587 = vmatprep.subr.bf16.mxu0 0
    %588 = vmatpush2.bf16.xpose.msra.mxu0 0
    %589 = vmatprep.subr.bf16.mxu0 0
    %590 = vmatpush2.bf16.xpose.msra.mxu0 0
    %591 = vmatprep.subr.bf16.mxu0 0
    %592 = vmatpush2.bf16.xpose.msra.mxu0 0
    %593 = vmatprep.mubr.bf16.mxu0 0
    %594 = vmatmul.mubr.bf16.gmra.mxu0 %v556
    %v595 = vpop.f32.mrf.mxu0
    %v596 = vadd.f32 0.0, %v595
    %v597 = vpop.f32.mrf.mxu0
    %v598 = vpop.f32.mrf.mxu0
    %v599 = vpop.f32.mrf.mxu0
    %600 = vdwg.mxu0
    %v601 = vmul.f32 %v546, 0.35355338
    %v602 = vmul.f32 %v596, 0.35355338
    %v603 = vsel %vm289, %v601, -inf
    %604 = vmax.xlane.f32.xlu0 %v603
    %v605 = vpop.xlane.xlu0 %604
    %v606 = vsel %vm289, %v602, -inf
    %607 = vmax.xlane.f32.xlu0 %v606
    %v608 = vpop.xlane.xlu0 %607
    %v609 = vsub.f32 %v601, %v605
    %v610 = vsub.f32 %v602, %v608
    %v611 = vmul.f32 %v609, 1.442695
    %v612 = vpow.pop %v611
    %v613 = vmul.f32 %v610, 1.442695
    %v614 = vpow.pop %v613
    %v615 = vsel %vm289, %v612, 0.0
    %616 = vadd.xlane.f32.xlu0 %v615
    %v617 = vpop.xlane.xlu0 %616
    %v618 = vsel %vm289, %v614, 0.0
    %619 = vadd.xlane.f32.xlu0 %v618
    %v620 = vpop.xlane.xlu0 %619
    %v621 = vrcp.pop %v617
    %v622 = vrcp.pop %v620
    %v623 = vmul.f32 %v612, %v621
    %v624 = vmul.f32 %v614, %v622
    %v625 = vpack.c.bf16 %v623, %v623
    %v626 = vpack.c.bf16 %v624, %v624
    %627 = vrot.lane.b32.xlu0 %v287, 120
    %v628 = vpop.permute.xlu0 %627
    %v630 = vsel %vm289, %v625, 0
    %v633 = vsel %vm411, %v628, 0
    %635 = vmatprep.subr.bf16.mxu0 0
    %636 = vmatpush1.bf16.msra.mxu0 0
    %637 = vmatprep.subr.bf16.mxu0 0
    %638 = vmatpush1.bf16.msra.mxu0 0
    %639 = vmatprep.subr.bf16.mxu0 0
    %640 = vmatpush1.bf16.msra.mxu0 0
    %641 = vmatprep.subr.bf16.mxu0 0
    %642 = vmatpush1.bf16.msra.mxu0 0
    %643 = vmatprep.subr.bf16.mxu0 0
    %644 = vmatpush1.bf16.msra.mxu0 0
    %645 = vmatprep.subr.bf16.mxu0 0
    %646 = vmatpush1.bf16.msra.mxu0 0
    %647 = vmatprep.subr.bf16.mxu0 0
    %648 = vmatpush1.bf16.msra.mxu0 0
    %649 = vmatprep.subr.bf16.mxu0 0
    %650 = vmatpush1.bf16.msra.mxu0 %v633
    %651 = vmatprep.subr.bf16.mxu0 0
    %652 = vmatpush2.bf16.msra.mxu0 0
    %653 = vmatprep.subr.bf16.mxu0 0
    %654 = vmatpush2.bf16.msra.mxu0 0
    %655 = vmatprep.subr.bf16.mxu0 0
    %656 = vmatpush2.bf16.msra.mxu0 0
    %657 = vmatprep.subr.bf16.mxu0 0
    %658 = vmatpush2.bf16.msra.mxu0 0
    %659 = vmatprep.subr.bf16.mxu0 0
    %660 = vmatpush2.bf16.msra.mxu0 0
    %661 = vmatprep.subr.bf16.mxu0 0
    %662 = vmatpush2.bf16.msra.mxu0 0
    %663 = vmatprep.subr.bf16.mxu0 0
    %664 = vmatpush2.bf16.msra.mxu0 0
    %665 = vmatprep.subr.bf16.mxu0 0
    %666 = vmatpush2.bf16.msra.mxu0 0
    %667 = vmatprep.mubr.bf16.mxu0 0
    %668 = vmatmul.mubr.bf16.gmra.mxu0 %v630
    %v669 = vpop.f32.mrf.mxu0
    %v670 = vadd.f32 0.0, %v669
    %v671 = vpop.f32.mrf.mxu0
    %v672 = vpop.f32.mrf.mxu0
    %v673 = vpop.f32.mrf.mxu0
    %674 = vdwg.mxu0
    %675 = vrot.lane.b32.xlu0 %v288, 120
    %v676 = vpop.permute.xlu0 %675
    %v678 = vsel %vm289, %v626, 0
    %v681 = vsel %vm411, %v676, 0
    %683 = vmatprep.subr.bf16.mxu0 0
    %684 = vmatpush1.bf16.msra.mxu0 0
    %685 = vmatprep.subr.bf16.mxu0 0
    %686 = vmatpush1.bf16.msra.mxu0 0
    %687 = vmatprep.subr.bf16.mxu0 0
    %688 = vmatpush1.bf16.msra.mxu0 0
    %689 = vmatprep.subr.bf16.mxu0 0
    %690 = vmatpush1.bf16.msra.mxu0 0
    %691 = vmatprep.subr.bf16.mxu0 0
    %692 = vmatpush1.bf16.msra.mxu0 0
    %693 = vmatprep.subr.bf16.mxu0 0
    %694 = vmatpush1.bf16.msra.mxu0 0
    %695 = vmatprep.subr.bf16.mxu0 0
    %696 = vmatpush1.bf16.msra.mxu0 0
    %697 = vmatprep.subr.bf16.mxu0 0
    %698 = vmatpush1.bf16.msra.mxu0 %v681
    %699 = vmatprep.subr.bf16.mxu0 0
    %700 = vmatpush2.bf16.msra.mxu0 0
    %701 = vmatprep.subr.bf16.mxu0 0
    %702 = vmatpush2.bf16.msra.mxu0 0
    %703 = vmatprep.subr.bf16.mxu0 0
    %704 = vmatpush2.bf16.msra.mxu0 0
    %705 = vmatprep.subr.bf16.mxu0 0
    %706 = vmatpush2.bf16.msra.mxu0 0
    %707 = vmatprep.subr.bf16.mxu0 0
    %708 = vmatpush2.bf16.msra.mxu0 0
    %709 = vmatprep.subr.bf16.mxu0 0
    %710 = vmatpush2.bf16.msra.mxu0 0
    %711 = vmatprep.subr.bf16.mxu0 0
    %712 = vmatpush2.bf16.msra.mxu0 0
    %713 = vmatprep.subr.bf16.mxu0 0
    %714 = vmatpush2.bf16.msra.mxu0 0
    %715 = vmatprep.mubr.bf16.mxu0 0
    %716 = vmatmul.mubr.bf16.gmra.mxu0 %v678
    %v717 = vpop.f32.mrf.mxu0
    %v718 = vadd.f32 0.0, %v717
    %v719 = vpop.f32.mrf.mxu0
    %v720 = vpop.f32.mrf.mxu0
    %v721 = vpop.f32.mrf.mxu0
    %722 = vdwg.mxu0
    %723 = vrot.lane.b32.xlu0 %v275, 112
    %v724 = vpop.permute.xlu0 %723
    %725 = vrot.lane.b32.xlu0 %v281, 112
    %v726 = vpop.permute.xlu0 %725
    %v728 = vsel %vm289, %v724, 0
    %v731 = vsel %vm289, %v726, 0
    %733 = vmatprep.subr.bf16.mxu0 0
    %734 = vmatpush1.bf16.xpose.msra.mxu0 0
    %735 = vmatprep.subr.bf16.mxu0 0
    %736 = vmatpush1.bf16.xpose.msra.mxu0 0
    %737 = vmatprep.subr.bf16.mxu0 0
    %738 = vmatpush1.bf16.xpose.msra.mxu0 0
    %739 = vmatprep.subr.bf16.mxu0 0
    %740 = vmatpush1.bf16.xpose.msra.mxu0 0
    %741 = vmatprep.subr.bf16.mxu0 0
    %742 = vmatpush1.bf16.xpose.msra.mxu0 0
    %743 = vmatprep.subr.bf16.mxu0 0
    %744 = vmatpush1.bf16.xpose.msra.mxu0 0
    %745 = vmatprep.subr.bf16.mxu0 0
    %746 = vmatpush1.bf16.xpose.msra.mxu0 0
    %747 = vmatprep.subr.bf16.mxu0 0
    %748 = vmatpush1.bf16.xpose.msra.mxu0 %v731
    %749 = vmatprep.subr.bf16.mxu0 0
    %750 = vmatpush2.bf16.xpose.msra.mxu0 0
    %751 = vmatprep.subr.bf16.mxu0 0
    %752 = vmatpush2.bf16.xpose.msra.mxu0 0
    %753 = vmatprep.subr.bf16.mxu0 0
    %754 = vmatpush2.bf16.xpose.msra.mxu0 0
    %755 = vmatprep.subr.bf16.mxu0 0
    %756 = vmatpush2.bf16.xpose.msra.mxu0 0
    %757 = vmatprep.subr.bf16.mxu0 0
    %758 = vmatpush2.bf16.xpose.msra.mxu0 0
    %759 = vmatprep.subr.bf16.mxu0 0
    %760 = vmatpush2.bf16.xpose.msra.mxu0 0
    %761 = vmatprep.subr.bf16.mxu0 0
    %762 = vmatpush2.bf16.xpose.msra.mxu0 0
    %763 = vmatprep.subr.bf16.mxu0 0
    %764 = vmatpush2.bf16.xpose.msra.mxu0 0
    %765 = vmatprep.mubr.bf16.mxu0 0
    %766 = vmatmul.mubr.bf16.gmra.mxu0 %v728
    %v767 = vpop.f32.mrf.mxu0
    %v768 = vadd.f32 0.0, %v767
    %v769 = vpop.f32.mrf.mxu0
    %v770 = vpop.f32.mrf.mxu0
    %v771 = vpop.f32.mrf.mxu0
    %772 = vdwg.mxu0
    %773 = vrot.lane.b32.xlu0 %v276, 112
    %v774 = vpop.permute.xlu0 %773
    %775 = vrot.lane.b32.xlu0 %v282, 112
    %v776 = vpop.permute.xlu0 %775
    %v778 = vsel %vm289, %v774, 0
    %v781 = vsel %vm289, %v776, 0
    %783 = vmatprep.subr.bf16.mxu0 0
    %784 = vmatpush1.bf16.xpose.msra.mxu0 0
    %785 = vmatprep.subr.bf16.mxu0 0
    %786 = vmatpush1.bf16.xpose.msra.mxu0 0
    %787 = vmatprep.subr.bf16.mxu0 0
    %788 = vmatpush1.bf16.xpose.msra.mxu0 0
    %789 = vmatprep.subr.bf16.mxu0 0
    %790 = vmatpush1.bf16.xpose.msra.mxu0 0
    %791 = vmatprep.subr.bf16.mxu0 0
    %792 = vmatpush1.bf16.xpose.msra.mxu0 0
    %793 = vmatprep.subr.bf16.mxu0 0
    %794 = vmatpush1.bf16.xpose.msra.mxu0 0
    %795 = vmatprep.subr.bf16.mxu0 0
    %796 = vmatpush1.bf16.xpose.msra.mxu0 0
    %797 = vmatprep.subr.bf16.mxu0 0
    %798 = vmatpush1.bf16.xpose.msra.mxu0 %v781
    %799 = vmatprep.subr.bf16.mxu0 0
    %800 = vmatpush2.bf16.xpose.msra.mxu0 0
    %801 = vmatprep.subr.bf16.mxu0 0
    %802 = vmatpush2.bf16.xpose.msra.mxu0 0
    %803 = vmatprep.subr.bf16.mxu0 0
    %804 = vmatpush2.bf16.xpose.msra.mxu0 0
    %805 = vmatprep.subr.bf16.mxu0 0
    %806 = vmatpush2.bf16.xpose.msra.mxu0 0
    %807 = vmatprep.subr.bf16.mxu0 0
    %808 = vmatpush2.bf16.xpose.msra.mxu0 0
    %809 = vmatprep.subr.bf16.mxu0 0
    %810 = vmatpush2.bf16.xpose.msra.mxu0 0
    %811 = vmatprep.subr.bf16.mxu0 0
    %812 = vmatpush2.bf16.xpose.msra.mxu0 0
    %813 = vmatprep.subr.bf16.mxu0 0
    %814 = vmatpush2.bf16.xpose.msra.mxu0 0
    %815 = vmatprep.mubr.bf16.mxu0 0
    %816 = vmatmul.mubr.bf16.gmra.mxu0 %v778
    %v817 = vpop.f32.mrf.mxu0
    %v818 = vadd.f32 0.0, %v817
    %v819 = vpop.f32.mrf.mxu0
    %v820 = vpop.f32.mrf.mxu0
    %v821 = vpop.f32.mrf.mxu0
    %822 = vdwg.mxu0
    %v823 = vmul.f32 %v768, 0.35355338
    %v824 = vmul.f32 %v818, 0.35355338
    %v825 = vsel %vm289, %v823, -inf
    %826 = vmax.xlane.f32.xlu0 %v825
    %v827 = vpop.xlane.xlu0 %826
    %v828 = vsel %vm289, %v824, -inf
    %829 = vmax.xlane.f32.xlu0 %v828
    %v830 = vpop.xlane.xlu0 %829
    %v831 = vsub.f32 %v823, %v827
    %v832 = vsub.f32 %v824, %v830
    %v833 = vmul.f32 %v831, 1.442695
    %v834 = vpow.pop %v833
    %v835 = vmul.f32 %v832, 1.442695
    %v836 = vpow.pop %v835
    %v837 = vsel %vm289, %v834, 0.0
    %838 = vadd.xlane.f32.xlu0 %v837
    %v839 = vpop.xlane.xlu0 %838
    %v840 = vsel %vm289, %v836, 0.0
    %841 = vadd.xlane.f32.xlu0 %v840
    %v842 = vpop.xlane.xlu0 %841
    %v843 = vrcp.pop %v839
    %v844 = vrcp.pop %v842
    %v845 = vmul.f32 %v834, %v843
    %v846 = vmul.f32 %v836, %v844
    %v847 = vpack.c.bf16 %v845, %v845
    %v848 = vpack.c.bf16 %v846, %v846
    %849 = vrot.lane.b32.xlu0 %v287, 112
    %v850 = vpop.permute.xlu0 %849
    %v852 = vsel %vm289, %v847, 0
    %v855 = vsel %vm411, %v850, 0
    %857 = vmatprep.subr.bf16.mxu0 0
    %858 = vmatpush1.bf16.msra.mxu0 0
    %859 = vmatprep.subr.bf16.mxu0 0
    %860 = vmatpush1.bf16.msra.mxu0 0
    %861 = vmatprep.subr.bf16.mxu0 0
    %862 = vmatpush1.bf16.msra.mxu0 0
    %863 = vmatprep.subr.bf16.mxu0 0
    %864 = vmatpush1.bf16.msra.mxu0 0
    %865 = vmatprep.subr.bf16.mxu0 0
    %866 = vmatpush1.bf16.msra.mxu0 0
    %867 = vmatprep.subr.bf16.mxu0 0
    %868 = vmatpush1.bf16.msra.mxu0 0
    %869 = vmatprep.subr.bf16.mxu0 0
    %870 = vmatpush1.bf16.msra.mxu0 0
    %871 = vmatprep.subr.bf16.mxu0 0
    %872 = vmatpush1.bf16.msra.mxu0 %v855
    %873 = vmatprep.subr.bf16.mxu0 0
    %874 = vmatpush2.bf16.msra.mxu0 0
    %875 = vmatprep.subr.bf16.mxu0 0
    %876 = vmatpush2.bf16.msra.mxu0 0
    %877 = vmatprep.subr.bf16.mxu0 0
    %878 = vmatpush2.bf16.msra.mxu0 0
    %879 = vmatprep.subr.bf16.mxu0 0
    %880 = vmatpush2.bf16.msra.mxu0 0
    %881 = vmatprep.subr.bf16.mxu0 0
    %882 = vmatpush2.bf16.msra.mxu0 0
    %883 = vmatprep.subr.bf16.mxu0 0
    %884 = vmatpush2.bf16.msra.mxu0 0
    %885 = vmatprep.subr.bf16.mxu0 0
    %886 = vmatpush2.bf16.msra.mxu0 0
    %887 = vmatprep.subr.bf16.mxu0 0
    %888 = vmatpush2.bf16.msra.mxu0 0
    %889 = vmatprep.mubr.bf16.mxu0 0
    %890 = vmatmul.mubr.bf16.gmra.mxu0 %v852
    %v891 = vpop.f32.mrf.mxu0
    %v892 = vadd.f32 0.0, %v891
    %v893 = vpop.f32.mrf.mxu0
    %v894 = vpop.f32.mrf.mxu0
    %v895 = vpop.f32.mrf.mxu0
    %896 = vdwg.mxu0
    %897 = vrot.lane.b32.xlu0 %v288, 112
    %v898 = vpop.permute.xlu0 %897
    %v900 = vsel %vm289, %v848, 0
    %v903 = vsel %vm411, %v898, 0
    %905 = vmatprep.subr.bf16.mxu0 0
    %906 = vmatpush1.bf16.msra.mxu0 0
    %907 = vmatprep.subr.bf16.mxu0 0
    %908 = vmatpush1.bf16.msra.mxu0 0
    %909 = vmatprep.subr.bf16.mxu0 0
    %910 = vmatpush1.bf16.msra.mxu0 0
    %911 = vmatprep.subr.bf16.mxu0 0
    %912 = vmatpush1.bf16.msra.mxu0 0
    %913 = vmatprep.subr.bf16.mxu0 0
    %914 = vmatpush1.bf16.msra.mxu0 0
    %915 = vmatprep.subr.bf16.mxu0 0
    %916 = vmatpush1.bf16.msra.mxu0 0
    %917 = vmatprep.subr.bf16.mxu0 0
    %918 = vmatpush1.bf16.msra.mxu0 0
    %919 = vmatprep.subr.bf16.mxu0 0
    %920 = vmatpush1.bf16.msra.mxu0 %v903
    %921 = vmatprep.subr.bf16.mxu0 0
    %922 = vmatpush2.bf16.msra.mxu0 0
    %923 = vmatprep.subr.bf16.mxu0 0
    %924 = vmatpush2.bf16.msra.mxu0 0
    %925 = vmatprep.subr.bf16.mxu0 0
    %926 = vmatpush2.bf16.msra.mxu0 0
    %927 = vmatprep.subr.bf16.mxu0 0
    %928 = vmatpush2.bf16.msra.mxu0 0
    %929 = vmatprep.subr.bf16.mxu0 0
    %930 = vmatpush2.bf16.msra.mxu0 0
    %931 = vmatprep.subr.bf16.mxu0 0
    %932 = vmatpush2.bf16.msra.mxu0 0
    %933 = vmatprep.subr.bf16.mxu0 0
    %934 = vmatpush2.bf16.msra.mxu0 0
    %935 = vmatprep.subr.bf16.mxu0 0
    %936 = vmatpush2.bf16.msra.mxu0 0
    %937 = vmatprep.mubr.bf16.mxu0 0
    %938 = vmatmul.mubr.bf16.gmra.mxu0 %v900
    %v939 = vpop.f32.mrf.mxu0
    %v940 = vadd.f32 0.0, %v939
    %v941 = vpop.f32.mrf.mxu0
    %v942 = vpop.f32.mrf.mxu0
    %v943 = vpop.f32.mrf.mxu0
    %944 = vdwg.mxu0
    %945 = vrot.lane.b32.xlu0 %v275, 104
    %v946 = vpop.permute.xlu0 %945
    %947 = vrot.lane.b32.xlu0 %v281, 104
    %v948 = vpop.permute.xlu0 %947
    %v950 = vsel %vm289, %v946, 0
    %v953 = vsel %vm289, %v948, 0
    %955 = vmatprep.subr.bf16.mxu0 0
    %956 = vmatpush1.bf16.xpose.msra.mxu0 0
    %957 = vmatprep.subr.bf16.mxu0 0
    %958 = vmatpush1.bf16.xpose.msra.mxu0 0
    %959 = vmatprep.subr.bf16.mxu0 0
    %960 = vmatpush1.bf16.xpose.msra.mxu0 0
    %961 = vmatprep.subr.bf16.mxu0 0
    %962 = vmatpush1.bf16.xpose.msra.mxu0 0
    %963 = vmatprep.subr.bf16.mxu0 0
    %964 = vmatpush1.bf16.xpose.msra.mxu0 0
    %965 = vmatprep.subr.bf16.mxu0 0
    %966 = vmatpush1.bf16.xpose.msra.mxu0 0
    %967 = vmatprep.subr.bf16.mxu0 0
    %968 = vmatpush1.bf16.xpose.msra.mxu0 0
    %969 = vmatprep.subr.bf16.mxu0 0
    %970 = vmatpush1.bf16.xpose.msra.mxu0 %v953
    %971 = vmatprep.subr.bf16.mxu0 0
    %972 = vmatpush2.bf16.xpose.msra.mxu0 0
    %973 = vmatprep.subr.bf16.mxu0 0
    %974 = vmatpush2.bf16.xpose.msra.mxu0 0
    %975 = vmatprep.subr.bf16.mxu0 0
    %976 = vmatpush2.bf16.xpose.msra.mxu0 0
    %977 = vmatprep.subr.bf16.mxu0 0
    %978 = vmatpush2.bf16.xpose.msra.mxu0 0
    %979 = vmatprep.subr.bf16.mxu0 0
    %980 = vmatpush2.bf16.xpose.msra.mxu0 0
    %981 = vmatprep.subr.bf16.mxu0 0
    %982 = vmatpush2.bf16.xpose.msra.mxu0 0
    %983 = vmatprep.subr.bf16.mxu0 0
    %984 = vmatpush2.bf16.xpose.msra.mxu0 0
    %985 = vmatprep.subr.bf16.mxu0 0
    %986 = vmatpush2.bf16.xpose.msra.mxu0 0
    %987 = vmatprep.mubr.bf16.mxu0 0
    %988 = vmatmul.mubr.bf16.gmra.mxu0 %v950
    %v989 = vpop.f32.mrf.mxu0
    %v990 = vadd.f32 0.0, %v989
    %v991 = vpop.f32.mrf.mxu0
    %v992 = vpop.f32.mrf.mxu0
    %v993 = vpop.f32.mrf.mxu0
    %994 = vdwg.mxu0
    %995 = vrot.lane.b32.xlu0 %v276, 104
    %v996 = vpop.permute.xlu0 %995
    %997 = vrot.lane.b32.xlu0 %v282, 104
    %v998 = vpop.permute.xlu0 %997
    %v1000 = vsel %vm289, %v996, 0
    %v1003 = vsel %vm289, %v998, 0
    %1005 = vmatprep.subr.bf16.mxu0 0
    %1006 = vmatpush1.bf16.xpose.msra.mxu0 0
    %1007 = vmatprep.subr.bf16.mxu0 0
    %1008 = vmatpush1.bf16.xpose.msra.mxu0 0
    %1009 = vmatprep.subr.bf16.mxu0 0
    %1010 = vmatpush1.bf16.xpose.msra.mxu0 0
    %1011 = vmatprep.subr.bf16.mxu0 0
    %1012 = vmatpush1.bf16.xpose.msra.mxu0 0
    %1013 = vmatprep.subr.bf16.mxu0 0
    %1014 = vmatpush1.bf16.xpose.msra.mxu0 0
    %1015 = vmatprep.subr.bf16.mxu0 0
    %1016 = vmatpush1.bf16.xpose.msra.mxu0 0
    %1017 = vmatprep.subr.bf16.mxu0 0
    %1018 = vmatpush1.bf16.xpose.msra.mxu0 0
    %1019 = vmatprep.subr.bf16.mxu0 0
    %1020 = vmatpush1.bf16.xpose.msra.mxu0 %v1003
    %1021 = vmatprep.subr.bf16.mxu0 0
    %1022 = vmatpush2.bf16.xpose.msra.mxu0 0
    %1023 = vmatprep.subr.bf16.mxu0 0
    %1024 = vmatpush2.bf16.xpose.msra.mxu0 0
    %1025 = vmatprep.subr.bf16.mxu0 0
    %1026 = vmatpush2.bf16.xpose.msra.mxu0 0
    %1027 = vmatprep.subr.bf16.mxu0 0
    %1028 = vmatpush2.bf16.xpose.msra.mxu0 0
    %1029 = vmatprep.subr.bf16.mxu0 0
    %1030 = vmatpush2.bf16.xpose.msra.mxu0 0
    %1031 = vmatprep.subr.bf16.mxu0 0
    %1032 = vmatpush2.bf16.xpose.msra.mxu0 0
    %1033 = vmatprep.subr.bf16.mxu0 0
    %1034 = vmatpush2.bf16.xpose.msra.mxu0 0
    %1035 = vmatprep.subr.bf16.mxu0 0
    %1036 = vmatpush2.bf16.xpose.msra.mxu0 0
    %1037 = vmatprep.mubr.bf16.mxu0 0
    %1038 = vmatmul.mubr.bf16.gmra.mxu0 %v1000
    %v1039 = vpop.f32.mrf.mxu0
    %v1040 = vadd.f32 0.0, %v1039
    %v1041 = vpop.f32.mrf.mxu0
    %v1042 = vpop.f32.mrf.mxu0
    %v1043 = vpop.f32.mrf.mxu0
    %1044 = vdwg.mxu0
    %v1045 = vmul.f32 %v990, 0.35355338
    %v1046 = vmul.f32 %v1040, 0.35355338
    %v1047 = vsel %vm289, %v1045, -inf
    %1048 = vmax.xlane.f32.xlu0 %v1047
    %v1049 = vpop.xlane.xlu0 %1048
    %v1050 = vsel %vm289, %v1046, -inf
    %1051 = vmax.xlane.f32.xlu0 %v1050
    %v1052 = vpop.xlane.xlu0 %1051
    %v1053 = vsub.f32 %v1045, %v1049
    %v1054 = vsub.f32 %v1046, %v1052
    %v1055 = vmul.f32 %v1053, 1.442695
    %v1056 = vpow.pop %v1055
    %v1057 = vmul.f32 %v1054, 1.442695
    %v1058 = vpow.pop %v1057
    %v1059 = vsel %vm289, %v1056, 0.0
    %1060 = vadd.xlane.f32.xlu0 %v1059
    %v1061 = vpop.xlane.xlu0 %1060
    %v1062 = vsel %vm289, %v1058, 0.0
    %1063 = vadd.xlane.f32.xlu0 %v1062
    %v1064 = vpop.xlane.xlu0 %1063
    %v1065 = vrcp.pop %v1061
    %v1066 = vrcp.pop %v1064
    %v1067 = vmul.f32 %v1056, %v1065
    %v1068 = vmul.f32 %v1058, %v1066
    %v1069 = vpack.c.bf16 %v1067, %v1067
    %v1070 = vpack.c.bf16 %v1068, %v1068
    %1071 = vrot.lane.b32.xlu0 %v287, 104
    %v1072 = vpop.permute.xlu0 %1071
    %v1074 = vsel %vm289, %v1069, 0
    %v1077 = vsel %vm411, %v1072, 0
    %1079 = vmatprep.subr.bf16.mxu0 0
    %1080 = vmatpush1.bf16.msra.mxu0 0
    %1081 = vmatprep.subr.bf16.mxu0 0
    %1082 = vmatpush1.bf16.msra.mxu0 0
    %1083 = vmatprep.subr.bf16.mxu0 0
    %1084 = vmatpush1.bf16.msra.mxu0 0
    %1085 = vmatprep.subr.bf16.mxu0 0
    %1086 = vmatpush1.bf16.msra.mxu0 0
    %1087 = vmatprep.subr.bf16.mxu0 0
    %1088 = vmatpush1.bf16.msra.mxu0 0
    %1089 = vmatprep.subr.bf16.mxu0 0
    %1090 = vmatpush1.bf16.msra.mxu0 0
    %1091 = vmatprep.subr.bf16.mxu0 0
    %1092 = vmatpush1.bf16.msra.mxu0 0
    %1093 = vmatprep.subr.bf16.mxu0 0
    %1094 = vmatpush1.bf16.msra.mxu0 %v1077
    %1095 = vmatprep.subr.bf16.mxu0 0
    %1096 = vmatpush2.bf16.msra.mxu0 0
    %1097 = vmatprep.subr.bf16.mxu0 0
    %1098 = vmatpush2.bf16.msra.mxu0 0
    %1099 = vmatprep.subr.bf16.mxu0 0
    %1100 = vmatpush2.bf16.msra.mxu0 0
    %1101 = vmatprep.subr.bf16.mxu0 0
    %1102 = vmatpush2.bf16.msra.mxu0 0
    %1103 = vmatprep.subr.bf16.mxu0 0
    %1104 = vmatpush2.bf16.msra.mxu0 0
    %1105 = vmatprep.subr.bf16.mxu0 0
    %1106 = vmatpush2.bf16.msra.mxu0 0
    %1107 = vmatprep.subr.bf16.mxu0 0
    %1108 = vmatpush2.bf16.msra.mxu0 0
    %1109 = vmatprep.subr.bf16.mxu0 0
    %1110 = vmatpush2.bf16.msra.mxu0 0
    %1111 = vmatprep.mubr.bf16.mxu0 0
    %1112 = vmatmul.mubr.bf16.gmra.mxu0 %v1074
    %v1113 = vpop.f32.mrf.mxu0
    %v1114 = vadd.f32 0.0, %v1113
    %v1115 = vpop.f32.mrf.mxu0
    %v1116 = vpop.f32.mrf.mxu0
    %v1117 = vpop.f32.mrf.mxu0
    %1118 = vdwg.mxu0
    %1119 = vrot.lane.b32.xlu0 %v288, 104
    %v1120 = vpop.permute.xlu0 %1119
    %v1122 = vsel %vm289, %v1070, 0
    %v1125 = vsel %vm411, %v1120, 0
    %1127 = vmatprep.subr.bf16.mxu0 0
    %1128 = vmatpush1.bf16.msra.mxu0 0
    %1129 = vmatprep.subr.bf16.mxu0 0
    %1130 = vmatpush1.bf16.msra.mxu0 0
    %1131 = vmatprep.subr.bf16.mxu0 0
    %1132 = vmatpush1.bf16.msra.mxu0 0
    %1133 = vmatprep.subr.bf16.mxu0 0
    %1134 = vmatpush1.bf16.msra.mxu0 0
    %1135 = vmatprep.subr.bf16.mxu0 0
    %1136 = vmatpush1.bf16.msra.mxu0 0
    %1137 = vmatprep.subr.bf16.mxu0 0
    %1138 = vmatpush1.bf16.msra.mxu0 0
    %1139 = vmatprep.subr.bf16.mxu0 0
    %1140 = vmatpush1.bf16.msra.mxu0 0
    %1141 = vmatprep.subr.bf16.mxu0 0
    %1142 = vmatpush1.bf16.msra.mxu0 %v1125
    %1143 = vmatprep.subr.bf16.mxu0 0
    %1144 = vmatpush2.bf16.msra.mxu0 0
    %1145 = vmatprep.subr.bf16.mxu0 0
    %1146 = vmatpush2.bf16.msra.mxu0 0
    %1147 = vmatprep.subr.bf16.mxu0 0
    %1148 = vmatpush2.bf16.msra.mxu0 0
    %1149 = vmatprep.subr.bf16.mxu0 0
    %1150 = vmatpush2.bf16.msra.mxu0 0
    %1151 = vmatprep.subr.bf16.mxu0 0
    %1152 = vmatpush2.bf16.msra.mxu0 0
    %1153 = vmatprep.subr.bf16.mxu0 0
    %1154 = vmatpush2.bf16.msra.mxu0 0
    %1155 = vmatprep.subr.bf16.mxu0 0
    %1156 = vmatpush2.bf16.msra.mxu0 0
    %1157 = vmatprep.subr.bf16.mxu0 0
    %1158 = vmatpush2.bf16.msra.mxu0 0
    %1159 = vmatprep.mubr.bf16.mxu0 0
    %1160 = vmatmul.mubr.bf16.gmra.mxu0 %v1122
    %v1161 = vpop.f32.mrf.mxu0
    %v1162 = vadd.f32 0.0, %v1161
    %v1163 = vpop.f32.mrf.mxu0
    %v1164 = vpop.f32.mrf.mxu0
    %v1165 = vpop.f32.mrf.mxu0
    %1166 = vdwg.mxu0
    %1169 = vrot.lane.b32.xlu0 %v670, 8
    %v1170 = vpop.permute.xlu0 %1169
    %1171 = vrot.lane.b32.xlu0 %v718, 8
    %v1172 = vpop.permute.xlu0 %1171
    %1177 = vrot.lane.b32.xlu0 %v892, 16
    %v1178 = vpop.permute.xlu0 %1177
    %1179 = vrot.lane.b32.xlu0 %v940, 16
    %v1180 = vpop.permute.xlu0 %1179
    %1185 = vrot.lane.b32.xlu0 %v1114, 24
    %v1186 = vpop.permute.xlu0 %1185
    %1187 = vrot.lane.b32.xlu0 %v1162, 24
    %v1188 = vpop.permute.xlu0 %1187
    %v1191 = vsel %vm289, %v450, %v1170
    %v1192 = vsel %vm289, %v496, %v1172
    %vm1193 = vcmask 130048
    %v1194 = vsel %vm1193, %v1191, %v1178
    %v1195 = vsel %vm1193, %v1192, %v1180
    %vm1196 = vcmask 195584
    %v1197 = vsel %vm1196, %v1194, %v1186
    %v1198 = vsel %vm1196, %v1195, %v1188
    %v1199 = vpack.c.bf16 %v1198, %v1197
    %v1200 = vld [vmem:[%s7] sm:$0xf]
    %v1201 = vld [vmem:[%s7 + $0x4] sm:$0xf]
    %v1202 = vld [vmem:[%s7 + $0x8] sm:$0xf]
    %v1203 = vld [vmem:[%s7 + $0xc] sm:$0xf]
    %v1204 = vld [vmem:[%s8] sm:$0x1]
    %v1206 = vlaneseq
    %v1207 = vshrl.u32 %v1206, 7
    %v1208 = vsub.s32 0, %v1207
    %v1209 = vrot.slane %v1204, %v1208
    %v1215 = vunpack.c.l.b16 %v1200
    %v1216 = vunpack.c.l.b16 %v1201
    %v1217 = vunpack.c.l.b16 %v1202
    %v1218 = vunpack.c.l.b16 %v1203
    %v1219 = vpack.c.b16 %v1216, %v1215
    %v1220 = vpack.c.b16 %v1218, %v1217
    %v1224 = vsel %vm98, %v1199, 0
    %1226 = vmatprep.subr.bf16.mxu0 0
    %1227 = vmatpush1.bf16.msra.mxu0 0
    %1228 = vmatprep.subr.bf16.mxu0 0
    %1229 = vmatpush1.bf16.msra.mxu0 0
    %1230 = vmatprep.subr.bf16.mxu0 0
    %1231 = vmatpush1.bf16.msra.mxu0 0
    %1232 = vmatprep.subr.bf16.mxu0 0
    %1233 = vmatpush1.bf16.msra.mxu0 0
    %1234 = vmatprep.subr.bf16.mxu0 0
    %1235 = vmatpush1.bf16.msra.mxu0 0
    %1236 = vmatprep.subr.bf16.mxu0 0
    %1237 = vmatpush1.bf16.msra.mxu0 0
    %1238 = vmatprep.subr.bf16.mxu0 0
    %1239 = vmatpush1.bf16.msra.mxu0 %v1220
    %1240 = vmatprep.subr.bf16.mxu0 0
    %1241 = vmatpush1.bf16.msra.mxu0 %v1219
    %1242 = vmatprep.subr.bf16.mxu0 0
    %1243 = vmatpush2.bf16.msra.mxu0 0
    %1244 = vmatprep.subr.bf16.mxu0 0
    %1245 = vmatpush2.bf16.msra.mxu0 0
    %1246 = vmatprep.subr.bf16.mxu0 0
    %1247 = vmatpush2.bf16.msra.mxu0 0
    %1248 = vmatprep.subr.bf16.mxu0 0
    %1249 = vmatpush2.bf16.msra.mxu0 0
    %1250 = vmatprep.subr.bf16.mxu0 0
    %1251 = vmatpush2.bf16.msra.mxu0 0
    %1252 = vmatprep.subr.bf16.mxu0 0
    %1253 = vmatpush2.bf16.msra.mxu0 0
    %1254 = vmatprep.subr.bf16.mxu0 0
    %1255 = vmatpush2.bf16.msra.mxu0 0
    %1256 = vmatprep.subr.bf16.mxu0 0
    %1257 = vmatpush2.bf16.msra.mxu0 0
    %1258 = vmatprep.mubr.bf16.mxu0 0
    %1259 = vmatmul.mubr.bf16.gmra.mxu0 %v1224
    %v1260 = vpop.f32.mrf.mxu0
    %v1261 = vadd.f32 %v1209, %v1260
    %v1262 = vpop.f32.mrf.mxu0
    %v1263 = vpop.f32.mrf.mxu0
    %v1264 = vadd.f32 %v1209, %v1263
    %v1265 = vpop.f32.mrf.mxu0
    %1266 = vdwg.mxu0
    %v1267 = vadd.f32 %v72, %v1261
    %v1268 = vadd.f32 %v73, %v1264
    %v1269 = vld [vmem:[%s9] sm:$0x1]
    %v1270 = vld [vmem:[%s10] sm:$0x1]
    %v1271 = vsel %vm98, %v1267, 0.0
    %1272 = vadd.xlane.f32.xlu0 %v1271
    %v1273 = vpop.xlane.xlu0 %1272
    %v1274 = vsel %vm98, %v1268, 0.0
    %1275 = vadd.xlane.f32.xlu0 %v1274
    %v1276 = vpop.xlane.xlu0 %1275
    %v1277 = vrcp.pop 32.0
    %v1278 = vmul.f32 %v1273, %v1277
    %v1279 = vmul.f32 %v1276, %v1277
    %v1280 = vsub.f32 %v1267, %v1278
    %v1281 = vsub.f32 %v1268, %v1279
    %v1282 = vmul.f32 %v1280, %v1280
    %v1283 = vmul.f32 %v1281, %v1281
    %v1284 = vsel %vm98, %v1282, 0.0
    %1285 = vadd.xlane.f32.xlu0 %v1284
    %v1286 = vpop.xlane.xlu0 %1285
    %v1287 = vsel %vm98, %v1283, 0.0
    %1288 = vadd.xlane.f32.xlu0 %v1287
    %v1289 = vpop.xlane.xlu0 %1288
    %v1290 = vmul.f32 %v1286, %v1277
    %v1291 = vmul.f32 %v1289, %v1277
    %v1292 = vadd.f32 %v1290, 1e-05
    %v1293 = vadd.f32 %v1291, 1e-05
    %v1294 = vrsqrt.pop %v1292
    %v1295 = vrsqrt.pop %v1293
    %v1296 = vmul.f32 %v1280, %v1294
    %v1297 = vmul.f32 %v1281, %v1295
    %v1299 = vlaneseq
    %v1300 = vshrl.u32 %v1299, 7
    %v1301 = vsub.s32 0, %v1300
    %v1302 = vrot.slane %v1269, %v1301
    %v1304 = vmul.f32 %v1296, %v1302
    %v1305 = vmul.f32 %v1297, %v1302
    %v1307 = vlaneseq
    %v1308 = vshrl.u32 %v1307, 7
    %v1309 = vsub.s32 0, %v1308
    %v1310 = vrot.slane %v1270, %v1309
    %v1312 = vadd.f32 %v1304, %v1310
    %v1313 = vadd.f32 %v1305, %v1310
    %v1314 = vpack.c.bf16 %v1313, %v1312
    %v1315 = vld [vmem:[#allocation2] sm:$0xf]
    %v1316 = vld [vmem:[#allocation2 + $0x4] sm:$0xf]
    %v1317 = vld [vmem:[#allocation2 + $0x8] sm:$0xf]
    %v1318 = vld [vmem:[#allocation2 + $0xc] sm:$0xf]
    %v1319 = vld [vmem:[%s12] sm:$0x1]
    %v1321 = vlaneseq
    %v1322 = vshrl.u32 %v1321, 7
    %v1323 = vsub.s32 0, %v1322
    %v1324 = vrot.slane %v1319, %v1323
    %v1330 = vunpack.c.l.b16 %v1315
    %v1331 = vunpack.c.l.b16 %v1316
    %v1332 = vunpack.c.l.b16 %v1317
    %v1333 = vunpack.c.l.b16 %v1318
    %v1334 = vpack.c.b16 %v1331, %v1330
    %v1335 = vpack.c.b16 %v1333, %v1332
    %v1339 = vsel %vm98, %v1314, 0
    %1341 = vmatprep.subr.bf16.mxu0 0
    %1342 = vmatpush1.bf16.msra.mxu0 0
    %1343 = vmatprep.subr.bf16.mxu0 0
    %1344 = vmatpush1.bf16.msra.mxu0 0
    %1345 = vmatprep.subr.bf16.mxu0 0
    %1346 = vmatpush1.bf16.msra.mxu0 0
    %1347 = vmatprep.subr.bf16.mxu0 0
    %1348 = vmatpush1.bf16.msra.mxu0 0
    %1349 = vmatprep.subr.bf16.mxu0 0
    %1350 = vmatpush1.bf16.msra.mxu0 0
    %1351 = vmatprep.subr.bf16.mxu0 0
    %1352 = vmatpush1.bf16.msra.mxu0 0
    %1353 = vmatprep.subr.bf16.mxu0 0
    %1354 = vmatpush1.bf16.msra.mxu0 %v1335
    %1355 = vmatprep.subr.bf16.mxu0 0
    %1356 = vmatpush1.bf16.msra.mxu0 %v1334
    %1357 = vmatprep.subr.bf16.mxu0 0
    %1358 = vmatpush2.bf16.msra.mxu0 0
    %1359 = vmatprep.subr.bf16.mxu0 0
    %1360 = vmatpush2.bf16.msra.mxu0 0
    %1361 = vmatprep.subr.bf16.mxu0 0
    %1362 = vmatpush2.bf16.msra.mxu0 0
    %1363 = vmatprep.subr.bf16.mxu0 0
    %1364 = vmatpush2.bf16.msra.mxu0 0
    %1365 = vmatprep.subr.bf16.mxu0 0
    %1366 = vmatpush2.bf16.msra.mxu0 0
    %1367 = vmatprep.subr.bf16.mxu0 0
    %1368 = vmatpush2.bf16.msra.mxu0 0
    %1369 = vmatprep.subr.bf16.mxu0 0
    %1370 = vmatpush2.bf16.msra.mxu0 0
    %1371 = vmatprep.subr.bf16.mxu0 0
    %1372 = vmatpush2.bf16.msra.mxu0 0
    %1373 = vmatprep.mubr.bf16.mxu0 0
    %1374 = vmatmul.mubr.bf16.gmra.mxu0 %v1339
    %v1375 = vpop.f32.mrf.mxu0
    %v1376 = vadd.f32 %v1324, %v1375
    %v1377 = vpop.f32.mrf.mxu0
    %v1378 = vpop.f32.mrf.mxu0
    %v1379 = vadd.f32 %v1324, %v1378
    %v1380 = vpop.f32.mrf.mxu0
    %1381 = vdwg.mxu0
    %v1382 = vmul.f32 %v1376, 0.5
    %v1383 = vmul.f32 %v1379, 0.5
    %v1384 = vmul.f32 %v1376, 0.70710677
    %v1385 = vmul.f32 %v1379, 0.70710677
    %v1386 = verf.f32.pop %v1384
    %v1387 = verf.f32.pop %v1385
    %v1388 = vadd.f32 %v1386, 1.0
    %v1389 = vadd.f32 %v1387, 1.0
    %v1390 = vmul.f32 %v1382, %v1388
    %v1391 = vmul.f32 %v1383, %v1389
    %v1392 = vpack.c.bf16 %v1391, %v1390
    %v1393 = vld [vmem:[%s13] sm:$0xf]
    %v1394 = vld [vmem:[%s13 + $0x4] sm:$0xf]
    %v1395 = vld [vmem:[%s13 + $0x8] sm:$0xf]
    %v1396 = vld [vmem:[%s13 + $0xc] sm:$0xf]
    %v1397 = vld [vmem:[%s13 + $0x10] sm:$0xf]
    %v1398 = vld [vmem:[%s13 + $0x14] sm:$0xf]
    %v1399 = vld [vmem:[%s13 + $0x18] sm:$0xf]
    %v1400 = vld [vmem:[%s13 + $0x1c] sm:$0xf]
    %v1401 = vld [vmem:[%s13 + $0x20] sm:$0xf]
    %v1402 = vld [vmem:[%s13 + $0x24] sm:$0xf]
    %v1403 = vld [vmem:[%s13 + $0x28] sm:$0xf]
    %v1404 = vld [vmem:[%s13 + $0x2c] sm:$0xf]
    %v1405 = vld [vmem:[%s13 + $0x30] sm:$0xf]
    %v1406 = vld [vmem:[%s13 + $0x34] sm:$0xf]
    %v1407 = vld [vmem:[%s13 + $0x38] sm:$0xf]
    %v1408 = vld [vmem:[%s13 + $0x3c] sm:$0xf]
    %v1409 = vld [vmem:[%s14] sm:$0x1]
    %v1411 = vlaneseq
    %v1412 = vshrl.u32 %v1411, 7
    %v1413 = vsub.s32 0, %v1412
    %v1414 = vrot.slane %v1409, %v1413
    %v1432 = vunpack.c.l.b16 %v1393
    %v1433 = vunpack.c.l.b16 %v1394
    %v1434 = vunpack.c.l.b16 %v1395
    %v1435 = vunpack.c.l.b16 %v1396
    %v1436 = vunpack.c.l.b16 %v1397
    %v1437 = vunpack.c.l.b16 %v1398
    %v1438 = vunpack.c.l.b16 %v1399
    %v1439 = vunpack.c.l.b16 %v1400
    %v1440 = vunpack.c.l.b16 %v1401
    %v1441 = vunpack.c.l.b16 %v1402
    %v1442 = vunpack.c.l.b16 %v1403
    %v1443 = vunpack.c.l.b16 %v1404
    %v1444 = vunpack.c.l.b16 %v1405
    %v1445 = vunpack.c.l.b16 %v1406
    %v1446 = vunpack.c.l.b16 %v1407
    %v1447 = vunpack.c.l.b16 %v1408
    %v1448 = vpack.c.b16 %v1433, %v1432
    %v1449 = vpack.c.b16 %v1435, %v1434
    %v1450 = vpack.c.b16 %v1437, %v1436
    %v1451 = vpack.c.b16 %v1439, %v1438
    %v1452 = vpack.c.b16 %v1441, %v1440
    %v1453 = vpack.c.b16 %v1443, %v1442
    %v1454 = vpack.c.b16 %v1445, %v1444
    %v1455 = vpack.c.b16 %v1447, %v1446
    %1464 = vmatprep.subr.bf16.mxu0 0
    %1465 = vmatpush1.bf16.msra.mxu0 %v1455
    %1466 = vmatprep.subr.bf16.mxu0 0
    %1467 = vmatpush1.bf16.msra.mxu0 %v1454
    %1468 = vmatprep.subr.bf16.mxu0 0
    %1469 = vmatpush1.bf16.msra.mxu0 %v1453
    %1470 = vmatprep.subr.bf16.mxu0 0
    %1471 = vmatpush1.bf16.msra.mxu0 %v1452
    %1472 = vmatprep.subr.bf16.mxu0 0
    %1473 = vmatpush1.bf16.msra.mxu0 %v1451
    %1474 = vmatprep.subr.bf16.mxu0 0
    %1475 = vmatpush1.bf16.msra.mxu0 %v1450
    %1476 = vmatprep.subr.bf16.mxu0 0
    %1477 = vmatpush1.bf16.msra.mxu0 %v1449
    %1478 = vmatprep.subr.bf16.mxu0 0
    %1479 = vmatpush1.bf16.msra.mxu0 %v1448
    %1480 = vmatprep.subr.bf16.mxu0 0
    %1481 = vmatpush2.bf16.msra.mxu0 0
    %1482 = vmatprep.subr.bf16.mxu0 0
    %1483 = vmatpush2.bf16.msra.mxu0 0
    %1484 = vmatprep.subr.bf16.mxu0 0
    %1485 = vmatpush2.bf16.msra.mxu0 0
    %1486 = vmatprep.subr.bf16.mxu0 0
    %1487 = vmatpush2.bf16.msra.mxu0 0
    %1488 = vmatprep.subr.bf16.mxu0 0
    %1489 = vmatpush2.bf16.msra.mxu0 0
    %1490 = vmatprep.subr.bf16.mxu0 0
    %1491 = vmatpush2.bf16.msra.mxu0 0
    %1492 = vmatprep.subr.bf16.mxu0 0
    %1493 = vmatpush2.bf16.msra.mxu0 0
    %1494 = vmatprep.subr.bf16.mxu0 0
    %1495 = vmatpush2.bf16.msra.mxu0 0
    %1496 = vmatprep.mubr.bf16.mxu0 0
    %1497 = vmatmul.mubr.bf16.gmra.mxu0 %v1392
    %v1498 = vpop.f32.mrf.mxu0
    %v1499 = vadd.f32 %v1414, %v1498
    %v1500 = vpop.f32.mrf.mxu0
    %v1501 = vpop.f32.mrf.mxu0
    %v1502 = vadd.f32 %v1414, %v1501
    %v1503 = vpop.f32.mrf.mxu0
    %1504 = vdwg.mxu0
    %v1505 = vadd.f32 %v1312, %v1499
    %v1506 = vadd.f32 %v1313, %v1502
    %v1507 = vld [vmem:[%s15] sm:$0x1]
    %v1508 = vld [vmem:[%s16] sm:$0x1]
    %v1509 = vsel %vm98, %v1505, 0.0
    %1510 = vadd.xlane.f32.xlu0 %v1509
    %v1511 = vpop.xlane.xlu0 %1510
    %v1512 = vsel %vm98, %v1506, 0.0
    %1513 = vadd.xlane.f32.xlu0 %v1512
    %v1514 = vpop.xlane.xlu0 %1513
    %v1515 = vmul.f32 %v1511, %v1277
    %v1516 = vmul.f32 %v1514, %v1277
    %v1517 = vsub.f32 %v1505, %v1515
    %v1518 = vsub.f32 %v1506, %v1516
    %v1519 = vmul.f32 %v1517, %v1517
    %v1520 = vmul.f32 %v1518, %v1518
    %v1521 = vsel %vm98, %v1519, 0.0
    %1522 = vadd.xlane.f32.xlu0 %v1521
    %v1523 = vpop.xlane.xlu0 %1522
    %v1524 = vsel %vm98, %v1520, 0.0
    %1525 = vadd.xlane.f32.xlu0 %v1524
    %v1526 = vpop.xlane.xlu0 %1525
    %v1527 = vmul.f32 %v1523, %v1277
    %v1528 = vmul.f32 %v1526, %v1277
    %v1529 = vadd.f32 %v1527, 1e-05
    %v1530 = vadd.f32 %v1528, 1e-05
    %v1531 = vrsqrt.pop %v1529
    %v1532 = vrsqrt.pop %v1530
    %v1533 = vmul.f32 %v1517, %v1531
    %v1534 = vmul.f32 %v1518, %v1532
    %v1536 = vlaneseq
    %v1537 = vshrl.u32 %v1536, 7
    %v1538 = vsub.s32 0, %v1537
    %v1539 = vrot.slane %v1507, %v1538
    %v1541 = vmul.f32 %v1533, %v1539
    %v1542 = vmul.f32 %v1534, %v1539
    %v1544 = vlaneseq
    %v1545 = vshrl.u32 %v1544, 7
    %v1546 = vsub.s32 0, %v1545
    %v1547 = vrot.slane %v1508, %v1546
    %v1549 = vadd.f32 %v1541, %v1547
    %v1550 = vadd.f32 %v1542, %v1547
    %1551 = vst.msk [vmem:[#allocation5] sm:$0xff] %vm98, %v1549
    %1552 = vst.msk [vmem:[#allocation5 + $0x8] sm:$0xff] %vm98, %v1550
    // Predicated region
    $region74: #{tpu_custom_call.1} parent=1 // pred_check
      _
    $region75: #{tpu_custom_call.1} parent=1 // pred_check_branch
      %1554 = sbr.rel (0) target = $region77
    $region76: #{tpu_custom_call.1} parent=1 // pred_region
      %s1556 = ssub.s32 256, 256
      %1557 = vsyncadd [#allocation4], %s1556
      %s1558 = sshll.u32 [#allocation5], 4
      %s1559 = int_to_ptr.vmem [resolvable:$true] %s1558
      %1564 = dma.vmem_to_hbm [thread:$0]  %s1559, 256, %s17, [#allocation4], 128, 128, 8
    $region77: #{tpu_custom_call.1} parent=1 // pred_fallthru
      _
    // Predicated region
    $region78: #{tpu_custom_call.1} parent=1 // pred_check
      _
    $region79: #{tpu_custom_call.1} parent=1 // pred_check_branch
      %1566 = sbr.rel (0) target = $region81
    $region80: #{tpu_custom_call.1} parent=1 // pred_region
      %1567 = dma.done [#allocation4], 256
    $region81: #{tpu_custom_call.1} parent=1 // pred_fallthru
      _
    %1568 = vsyncpa [#allocation3], 1
    %1569 = vsyncpa [#allocation4], 1

</llo_original>
